<compile_context>
chip_gen: v5e
topology: v5e:2x2
jax: 0.10.0
libtpu: 0.0.40
codegen_flags: <defaults>
</compile_context>

<pallas_src>
import jax
import jax.numpy as jnp
from jax.experimental import pallas as pl
from jax.experimental.pallas import tpu as pltpu  # noqa: F401 (not needed at this tiny size)

# ---------------- config (small synthetic BERT) ----------------
B, S = 2, 8          # batch, sequence length
H = 32               # hidden size
NH, HD = 2, 16       # num heads, head dim
FF = 64              # FFN intermediate size
L = 2                # number of transformer layers
VOCAB = 100
MAX_POS = 16
LN_EPS = 1e-12


# ---------------- in-kernel helpers ----------------
def _layer_norm(x, gamma, beta):
    mu = jnp.mean(x, axis=-1, keepdims=True)
    var = jnp.mean((x - mu) ** 2, axis=-1, keepdims=True)
    return (x - mu) * jax.lax.rsqrt(var + LN_EPS) * gamma + beta


def _gelu(x):
    c = 0.7978845608028654  # sqrt(2/pi)
    return 0.5 * x * (1.0 + jnp.tanh(c * (x + 0.044715 * x * x * x)))


# ---------------- fused encoder kernel ----------------
def encoder_kernel(x_ref, emb_g_ref, emb_b_ref,
                   wq_ref, bq_ref, wk_ref, bk_ref, wv_ref, bv_ref,
                   wo_ref, bo_ref, ln1_g_ref, ln1_b_ref,
                   wi_ref, bi_ref, wp_ref, bp_ref, ln2_g_ref, ln2_b_ref,
                   o_ref):
    # Whole batch in one block: fold batch into the sublane axis -> (B*S, H).
    x = _layer_norm(x_ref[...].reshape(B * S, H), emb_g_ref[...], emb_b_ref[...])

    scale = 1.0 / (HD ** 0.5)
    for l in range(L):  # static unroll; all layer weights already resident in VMEM
        # Hoist all weight / bias / LN loads for this layer (each ref read once).
        wq, wk, wv, wo = wq_ref[l], wk_ref[l], wv_ref[l], wo_ref[l]
        bq, bk, bv, bo = bq_ref[l], bk_ref[l], bv_ref[l], bo_ref[l]
        g1, be1 = ln1_g_ref[l], ln1_b_ref[l]
        wi, bi = wi_ref[l], bi_ref[l]
        wp, bp = wp_ref[l], bp_ref[l]
        g2, be2 = ln2_g_ref[l], ln2_b_ref[l]

        # QKV projections on the full (B*S, H) slab.
        q = jnp.dot(x, wq, preferred_element_type=jnp.float32) + bq
        k = jnp.dot(x, wk, preferred_element_type=jnp.float32) + bk
        v = jnp.dot(x, wv, preferred_element_type=jnp.float32) + bv

        q3 = q.reshape(B, S, H)
        k3 = k.reshape(B, S, H)
        v3 = v.reshape(B, S, H)

        # Multi-head attention: batched-over-B einsums, static unroll over NH=2
        # heads.  The per-head output projection replaces the lane-dim concat:
        #   ctx @ wo == sum_h ctx_h @ wo[h*HD:(h+1)*HD, :]
        attn = None
        for h in range(NH):
            sl = slice(h * HD, (h + 1) * HD)
            qs, ks, vs = q3[:, :, sl], k3[:, :, sl], v3[:, :, sl]
            s = jnp.einsum("bqd,bkd->bqk", qs, ks,
                           preferred_element_type=jnp.float32) * scale       # (B, S, S)
            m = jnp.max(s, axis=-1, keepdims=True)
            e = jnp.exp(s - m)
            # EUP reciprocal instead of a VPU divide.
            p = e * pl.reciprocal(jnp.sum(e, axis=-1, keepdims=True), approx=True)
            ctx_h = jnp.einsum("bqk,bkd->bqd", p, vs,
                               preferred_element_type=jnp.float32)           # (B, S, HD)
            proj = jnp.dot(ctx_h.reshape(B * S, HD), wo[sl, :],
                           preferred_element_type=jnp.float32)               # (B*S, H)
            attn = proj if attn is None else attn + proj
        attn = attn + bo

        h1 = _layer_norm(x + attn, g1, be1)                  # post-LN (BERT style)

        # Feed-forward.
        inter = _gelu(jnp.dot(h1, wi, preferred_element_type=jnp.float32) + bi)
        ffn = jnp.dot(inter, wp, preferred_element_type=jnp.float32) + bp
        x = _layer_norm(h1 + ffn, g2, be2)

    # mean over the sequence axis -> (B, H); single tiny store at kernel end.
    o_ref[...] = jnp.mean(x.reshape(B, S, H), axis=1)


# ---------------- wrapper ----------------
def _encoder_bert_forward(question_ids, params):
    # Embedding lookup: plain-JAX gather glue.
    x = (params["tok_emb"][question_ids]
         + params["pos_emb"][None, :S, :]
         + params["type_emb"][0][None, None, :])
    args = (x, params["emb_ln_g"], params["emb_ln_b"],
            params["wq"], params["bq"], params["wk"], params["bk"],
            params["wv"], params["bv"], params["wo"], params["bo"],
            params["ln1_g"], params["ln1_b"],
            params["wi"], params["bi"], params["wp"], params["bp"],
            params["ln2_g"], params["ln2_b"])
    # Single fused pallas_call: no grid, whole arrays as full VMEM blocks
    # (weights + activations total well under 1 MiB for this config).
    return pl.pallas_call(
        encoder_kernel,
        out_shape=jax.ShapeDtypeStruct((B, H), jnp.float32),
    )(*args)


encoder_bert_forward = jax.jit(_encoder_bert_forward)


# ---------------- parameter init (deterministic, synthetic) ----------------
def init_params(key):
    def normal(k, shape):
        return 0.02 * jax.random.normal(k, shape, dtype=jnp.float32)

    ks = iter(jax.random.split(key, 21))
    return {
        "tok_emb": normal(next(ks), (VOCAB, H)),
        "pos_emb": normal(next(ks), (MAX_POS, H)),
        "type_emb": normal(next(ks), (2, H)),
        "emb_ln_g": 1.0 + normal(next(ks), (1, H)),
        "emb_ln_b": normal(next(ks), (1, H)),
        # per-layer weights stacked along a leading L axis
        "wq": normal(next(ks), (L, H, H)), "bq": normal(next(ks), (L, 1, H)),
        "wk": normal(next(ks), (L, H, H)), "bk": normal(next(ks), (L, 1, H)),
        "wv": normal(next(ks), (L, H, H)), "bv": normal(next(ks), (L, 1, H)),
        "wo": normal(next(ks), (L, H, H)), "bo": normal(next(ks), (L, 1, H)),
        "ln1_g": 1.0 + normal(next(ks), (L, 1, H)), "ln1_b": normal(next(ks), (L, 1, H)),
        "wi": normal(next(ks), (L, H, FF)), "bi": normal(next(ks), (L, 1, FF)),
        "wp": normal(next(ks), (L, FF, H)), "bp": normal(next(ks), (L, 1, H)),
        "ln2_g": 1.0 + normal(next(ks), (L, 1, H)), "ln2_b": normal(next(ks), (L, 1, H)),
    }


# ---------------- pure-JAX reference for validation ----------------
def _ref_forward(question_ids, p):
    x = (p["tok_emb"][question_ids]
         + p["pos_emb"][None, :S, :]
         + p["type_emb"][0][None, None, :])
    x = _layer_norm(x, p["emb_ln_g"], p["emb_ln_b"])
    for l in range(L):
        q = x @ p["wq"][l] + p["bq"][l]
        k = x @ p["wk"][l] + p["bk"][l]
        v = x @ p["wv"][l] + p["bv"][l]
        q = q.reshape(B, S, NH, HD).transpose(0, 2, 1, 3)
        k = k.reshape(B, S, NH, HD).transpose(0, 2, 1, 3)
        v = v.reshape(B, S, NH, HD).transpose(0, 2, 1, 3)
        s = jnp.einsum("bhqd,bhkd->bhqk", q, k) / (HD ** 0.5)
        pr = jax.nn.softmax(s, axis=-1)
        ctx = jnp.einsum("bhqk,bhkd->bhqd", pr, v).transpose(0, 2, 1, 3).reshape(B, S, H)
        attn = ctx @ p["wo"][l] + p["bo"][l]
        h1 = _layer_norm(x + attn, p["ln1_g"][l], p["ln1_b"][l])
        ffn = _gelu(h1 @ p["wi"][l] + p["bi"][l]) @ p["wp"][l] + p["bp"][l]
        x = _layer_norm(h1 + ffn, p["ln2_g"][l], p["ln2_b"][l])
    return x.mean(axis=1)


if __name__ == "__main__":
    key = jax.random.PRNGKey(0)
    k_param, k_ids = jax.random.split(key)
    params = init_params(k_param)
    question_ids = jax.random.randint(k_ids, (B, S), 0, VOCAB, dtype=jnp.int32)

    q_emb = encoder_bert_forward(question_ids, params)
    q_emb = jax.block_until_ready(q_emb)
    assert q_emb.shape == (B, H)

    ref = _ref_forward(question_ids, params)
    assert jnp.allclose(q_emb, ref, atol=2e-3, rtol=2e-3), "mismatch vs reference"

    print("KERNEL_OK")
</pallas_src>

<mosaic_0001>
module attributes {stable_mosaic.version = 11 : i64} {
  func.func @encoder_kernel(%arg0: memref<2x8x32xf32, #tpu.memory_space<vmem>>, %arg1: memref<1x32xf32, #tpu.memory_space<vmem>>, %arg2: memref<1x32xf32, #tpu.memory_space<vmem>>, %arg3: memref<2x32x32xf32, #tpu.memory_space<vmem>>, %arg4: memref<2x1x32xf32, #tpu.memory_space<vmem>>, %arg5: memref<2x32x32xf32, #tpu.memory_space<vmem>>, %arg6: memref<2x1x32xf32, #tpu.memory_space<vmem>>, %arg7: memref<2x32x32xf32, #tpu.memory_space<vmem>>, %arg8: memref<2x1x32xf32, #tpu.memory_space<vmem>>, %arg9: memref<2x32x32xf32, #tpu.memory_space<vmem>>, %arg10: memref<2x1x32xf32, #tpu.memory_space<vmem>>, %arg11: memref<2x1x32xf32, #tpu.memory_space<vmem>>, %arg12: memref<2x1x32xf32, #tpu.memory_space<vmem>>, %arg13: memref<2x32x64xf32, #tpu.memory_space<vmem>>, %arg14: memref<2x1x64xf32, #tpu.memory_space<vmem>>, %arg15: memref<2x64x32xf32, #tpu.memory_space<vmem>>, %arg16: memref<2x1x32xf32, #tpu.memory_space<vmem>>, %arg17: memref<2x1x32xf32, #tpu.memory_space<vmem>>, %arg18: memref<2x1x32xf32, #tpu.memory_space<vmem>>, %arg19: memref<2x32xf32, #tpu.memory_space<vmem>>) attributes {dimension_semantics = [], scalar_prefetch = 0 : i64, scratch_operands = 0 : i64, tpu.core_type = #tpu.core_type<tc>} {
    %c0 = arith.constant 0 : index
    %c0_0 = arith.constant 0 : index
    %c0_1 = arith.constant 0 : index
    %0 = vector.load %arg0[%c0, %c0_0, %c0_1] : memref<2x8x32xf32, #tpu.memory_space<vmem>>, vector<2x8x32xf32>
    %1 = vector.shape_cast %0 : vector<2x8x32xf32> to vector<16x32xf32>
    %c0_2 = arith.constant 0 : index
    %c0_3 = arith.constant 0 : index
    %2 = vector.load %arg1[%c0_2, %c0_3] : memref<1x32xf32, #tpu.memory_space<vmem>>, vector<1x32xf32>
    %c0_4 = arith.constant 0 : index
    %c0_5 = arith.constant 0 : index
    %3 = vector.load %arg2[%c0_4, %c0_5] : memref<1x32xf32, #tpu.memory_space<vmem>>, vector<1x32xf32>
    %cst = arith.constant dense<0.000000e+00> : vector<16xf32>
    %4 = vector.multi_reduction <add>, %1, %cst [1] : vector<16x32xf32> to vector<16xf32>
    %5 = vector.shape_cast %4 : vector<16xf32> to vector<16x1xf32>
    %cst_6 = arith.constant 3.200000e+01 : f32
    %6 = vector.broadcast %cst_6 : f32 to vector<16x1xf32>
    %7 = arith.divf %5, %6 : vector<16x1xf32>
    %8 = vector.broadcast %7 : vector<16x1xf32> to vector<16x32xf32>
    %9 = arith.subf %1, %8 : vector<16x32xf32>
    %10 = arith.mulf %9, %9 : vector<16x32xf32>
    %cst_7 = arith.constant dense<0.000000e+00> : vector<16xf32>
    %11 = vector.multi_reduction <add>, %10, %cst_7 [1] : vector<16x32xf32> to vector<16xf32>
    %12 = vector.shape_cast %11 : vector<16xf32> to vector<16x1xf32>
    %cst_8 = arith.constant 3.200000e+01 : f32
    %13 = vector.broadcast %cst_8 : f32 to vector<16x1xf32>
    %14 = arith.divf %12, %13 : vector<16x1xf32>
    %15 = vector.broadcast %7 : vector<16x1xf32> to vector<16x32xf32>
    %16 = arith.subf %1, %15 : vector<16x32xf32>
    %cst_9 = arith.constant 9.99999996E-13 : f32
    %17 = vector.broadcast %cst_9 : f32 to vector<16x1xf32>
    %18 = arith.addf %14, %17 : vector<16x1xf32>
    %19 = math.rsqrt %18 : vector<16x1xf32>
    %20 = vector.broadcast %19 : vector<16x1xf32> to vector<16x32xf32>
    %21 = arith.mulf %16, %20 : vector<16x32xf32>
    %22 = vector.broadcast %2 : vector<1x32xf32> to vector<16x32xf32>
    %23 = arith.mulf %21, %22 : vector<16x32xf32>
    %24 = vector.broadcast %3 : vector<1x32xf32> to vector<16x32xf32>
    %25 = arith.addf %23, %24 : vector<16x32xf32>
    %c0_10 = arith.constant 0 : index
    %c0_11 = arith.constant 0 : index
    %c0_12 = arith.constant 0 : index
    %26 = vector.load %arg3[%c0_10, %c0_11, %c0_12] : memref<2x32x32xf32, #tpu.memory_space<vmem>>, vector<1x32x32xf32>
    %27 = vector.shape_cast %26 : vector<1x32x32xf32> to vector<32x32xf32>
    %c0_13 = arith.constant 0 : index
    %c0_14 = arith.constant 0 : index
    %c0_15 = arith.constant 0 : index
    %28 = vector.load %arg5[%c0_13, %c0_14, %c0_15] : memref<2x32x32xf32, #tpu.memory_space<vmem>>, vector<1x32x32xf32>
    %29 = vector.shape_cast %28 : vector<1x32x32xf32> to vector<32x32xf32>
    %c0_16 = arith.constant 0 : index
    %c0_17 = arith.constant 0 : index
    %c0_18 = arith.constant 0 : index
    %30 = vector.load %arg7[%c0_16, %c0_17, %c0_18] : memref<2x32x32xf32, #tpu.memory_space<vmem>>, vector<1x32x32xf32>
    %31 = vector.shape_cast %30 : vector<1x32x32xf32> to vector<32x32xf32>
    %c0_19 = arith.constant 0 : index
    %c0_20 = arith.constant 0 : index
    %c0_21 = arith.constant 0 : index
    %32 = vector.load %arg9[%c0_19, %c0_20, %c0_21] : memref<2x32x32xf32, #tpu.memory_space<vmem>>, vector<1x32x32xf32>
    %33 = vector.shape_cast %32 : vector<1x32x32xf32> to vector<32x32xf32>
    %c0_22 = arith.constant 0 : index
    %c0_23 = arith.constant 0 : index
    %c0_24 = arith.constant 0 : index
    %34 = vector.load %arg4[%c0_22, %c0_23, %c0_24] : memref<2x1x32xf32, #tpu.memory_space<vmem>>, vector<1x1x32xf32>
    %35 = vector.shape_cast %34 : vector<1x1x32xf32> to vector<1x32xf32>
    %c0_25 = arith.constant 0 : index
    %c0_26 = arith.constant 0 : index
    %c0_27 = arith.constant 0 : index
    %36 = vector.load %arg6[%c0_25, %c0_26, %c0_27] : memref<2x1x32xf32, #tpu.memory_space<vmem>>, vector<1x1x32xf32>
    %37 = vector.shape_cast %36 : vector<1x1x32xf32> to vector<1x32xf32>
    %c0_28 = arith.constant 0 : index
    %c0_29 = arith.constant 0 : index
    %c0_30 = arith.constant 0 : index
    %38 = vector.load %arg8[%c0_28, %c0_29, %c0_30] : memref<2x1x32xf32, #tpu.memory_space<vmem>>, vector<1x1x32xf32>
    %39 = vector.shape_cast %38 : vector<1x1x32xf32> to vector<1x32xf32>
    %c0_31 = arith.constant 0 : index
    %c0_32 = arith.constant 0 : index
    %c0_33 = arith.constant 0 : index
    %40 = vector.load %arg10[%c0_31, %c0_32, %c0_33] : memref<2x1x32xf32, #tpu.memory_space<vmem>>, vector<1x1x32xf32>
    %41 = vector.shape_cast %40 : vector<1x1x32xf32> to vector<1x32xf32>
    %c0_34 = arith.constant 0 : index
    %c0_35 = arith.constant 0 : index
    %c0_36 = arith.constant 0 : index
    %42 = vector.load %arg11[%c0_34, %c0_35, %c0_36] : memref<2x1x32xf32, #tpu.memory_space<vmem>>, vector<1x1x32xf32>
    %43 = vector.shape_cast %42 : vector<1x1x32xf32> to vector<1x32xf32>
    %c0_37 = arith.constant 0 : index
    %c0_38 = arith.constant 0 : index
    %c0_39 = arith.constant 0 : index
    %44 = vector.load %arg12[%c0_37, %c0_38, %c0_39] : memref<2x1x32xf32, #tpu.memory_space<vmem>>, vector<1x1x32xf32>
    %45 = vector.shape_cast %44 : vector<1x1x32xf32> to vector<1x32xf32>
    %c0_40 = arith.constant 0 : index
    %c0_41 = arith.constant 0 : index
    %c0_42 = arith.constant 0 : index
    %46 = vector.load %arg13[%c0_40, %c0_41, %c0_42] : memref<2x32x64xf32, #tpu.memory_space<vmem>>, vector<1x32x64xf32>
    %47 = vector.shape_cast %46 : vector<1x32x64xf32> to vector<32x64xf32>
    %c0_43 = arith.constant 0 : index
    %c0_44 = arith.constant 0 : index
    %c0_45 = arith.constant 0 : index
    %48 = vector.load %arg14[%c0_43, %c0_44, %c0_45] : memref<2x1x64xf32, #tpu.memory_space<vmem>>, vector<1x1x64xf32>
    %49 = vector.shape_cast %48 : vector<1x1x64xf32> to vector<1x64xf32>
    %c0_46 = arith.constant 0 : index
    %c0_47 = arith.constant 0 : index
    %c0_48 = arith.constant 0 : index
    %50 = vector.load %arg15[%c0_46, %c0_47, %c0_48] : memref<2x64x32xf32, #tpu.memory_space<vmem>>, vector<1x64x32xf32>
    %51 = vector.shape_cast %50 : vector<1x64x32xf32> to vector<64x32xf32>
    %c0_49 = arith.constant 0 : index
    %c0_50 = arith.constant 0 : index
    %c0_51 = arith.constant 0 : index
    %52 = vector.load %arg16[%c0_49, %c0_50, %c0_51] : memref<2x1x32xf32, #tpu.memory_space<vmem>>, vector<1x1x32xf32>
    %53 = vector.shape_cast %52 : vector<1x1x32xf32> to vector<1x32xf32>
    %c0_52 = arith.constant 0 : index
    %c0_53 = arith.constant 0 : index
    %c0_54 = arith.constant 0 : index
    %54 = vector.load %arg17[%c0_52, %c0_53, %c0_54] : memref<2x1x32xf32, #tpu.memory_space<vmem>>, vector<1x1x32xf32>
    %55 = vector.shape_cast %54 : vector<1x1x32xf32> to vector<1x32xf32>
    %c0_55 = arith.constant 0 : index
    %c0_56 = arith.constant 0 : index
    %c0_57 = arith.constant 0 : index
    %56 = vector.load %arg18[%c0_55, %c0_56, %c0_57] : memref<2x1x32xf32, #tpu.memory_space<vmem>>, vector<1x1x32xf32>
    %57 = vector.shape_cast %56 : vector<1x1x32xf32> to vector<1x32xf32>
    %cst_58 = arith.constant dense<0.000000e+00> : vector<16x32xf32>
    %58 = tpu.matmul %25, %27, %cst_58 {dimension_numbers = #tpu.dot_dimension_numbers<[1], [0], [0], [1], [0, 0, 1, 1], [], []>} : vector<16x32xf32>, vector<32x32xf32>, vector<16x32xf32> -> vector<16x32xf32>
    %59 = vector.broadcast %35 : vector<1x32xf32> to vector<16x32xf32>
    %60 = arith.addf %58, %59 : vector<16x32xf32>
    %cst_59 = arith.constant dense<0.000000e+00> : vector<16x32xf32>
    %61 = tpu.matmul %25, %29, %cst_59 {dimension_numbers = #tpu.dot_dimension_numbers<[1], [0], [0], [1], [0, 0, 1, 1], [], []>} : vector<16x32xf32>, vector<32x32xf32>, vector<16x32xf32> -> vector<16x32xf32>
    %62 = vector.broadcast %37 : vector<1x32xf32> to vector<16x32xf32>
    %63 = arith.addf %61, %62 : vector<16x32xf32>
    %cst_60 = arith.constant dense<0.000000e+00> : vector<16x32xf32>
    %64 = tpu.matmul %25, %31, %cst_60 {dimension_numbers = #tpu.dot_dimension_numbers<[1], [0], [0], [1], [0, 0, 1, 1], [], []>} : vector<16x32xf32>, vector<32x32xf32>, vector<16x32xf32> -> vector<16x32xf32>
    %65 = vector.broadcast %39 : vector<1x32xf32> to vector<16x32xf32>
    %66 = arith.addf %64, %65 : vector<16x32xf32>
    %67 = vector.shape_cast %60 : vector<16x32xf32> to vector<2x8x32xf32>
    %68 = vector.shape_cast %63 : vector<16x32xf32> to vector<2x8x32xf32>
    %69 = vector.shape_cast %66 : vector<16x32xf32> to vector<2x8x32xf32>
    %70 = vector.extract_strided_slice %67 {offsets = [0, 0, 0], sizes = [2, 8, 16], strides = [1, 1, 1]} : vector<2x8x32xf32> to vector<2x8x16xf32>
    %71 = vector.extract_strided_slice %68 {offsets = [0, 0, 0], sizes = [2, 8, 16], strides = [1, 1, 1]} : vector<2x8x32xf32> to vector<2x8x16xf32>
    %72 = vector.extract_strided_slice %69 {offsets = [0, 0, 0], sizes = [2, 8, 16], strides = [1, 1, 1]} : vector<2x8x32xf32> to vector<2x8x16xf32>
    "tpu.trace_start"() <{level = 10 : i32, message = "bqd,bkd->bqk"}> : () -> ()
    %cst_61 = arith.constant dense<0.000000e+00> : vector<2x8x8xf32>
    %73 = tpu.matmul %70, %71, %cst_61 {dimension_numbers = #tpu.dot_dimension_numbers<[2], [2], [1], [1], [0, 0, 0, 1, 1, 1], [0], [0]>} : vector<2x8x16xf32>, vector<2x8x16xf32>, vector<2x8x8xf32> -> vector<2x8x8xf32>
    "tpu.trace_stop"() : () -> ()
    %cst_62 = arith.constant 2.500000e-01 : f32
    %74 = vector.broadcast %cst_62 : f32 to vector<2x8x8xf32>
    %75 = arith.mulf %73, %74 : vector<2x8x8xf32>
    %cst_63 = arith.constant dense<0xFF800000> : vector<2x8xf32>
    %76 = vector.multi_reduction <maximumf>, %75, %cst_63 [2] : vector<2x8x8xf32> to vector<2x8xf32>
    %77 = vector.shape_cast %76 : vector<2x8xf32> to vector<2x8x1xf32>
    %78 = vector.broadcast %77 : vector<2x8x1xf32> to vector<2x8x8xf32>
    %79 = arith.subf %75, %78 : vector<2x8x8xf32>
    %80 = math.exp %79 : vector<2x8x8xf32>
    %cst_64 = arith.constant dense<0.000000e+00> : vector<2x8xf32>
    %81 = vector.multi_reduction <add>, %80, %cst_64 [2] : vector<2x8x8xf32> to vector<2x8xf32>
    %82 = vector.shape_cast %81 : vector<2x8xf32> to vector<2x8x1xf32>
    %83 = tpu.reciprocal %82 {approx = true} : vector<2x8x1xf32> -> vector<2x8x1xf32>
    %84 = vector.broadcast %83 : vector<2x8x1xf32> to vector<2x8x8xf32>
    %85 = arith.mulf %80, %84 : vector<2x8x8xf32>
    "tpu.trace_start"() <{level = 10 : i32, message = "bqk,bkd->bqd"}> : () -> ()
    %cst_65 = arith.constant dense<0.000000e+00> : vector<2x8x16xf32>
    %86 = tpu.matmul %85, %72, %cst_65 {dimension_numbers = #tpu.dot_dimension_numbers<[2], [1], [1], [2], [0, 0, 0, 1, 1, 2], [0], [0]>} : vector<2x8x8xf32>, vector<2x8x16xf32>, vector<2x8x16xf32> -> vector<2x8x16xf32>
    "tpu.trace_stop"() : () -> ()
    %87 = vector.shape_cast %86 : vector<2x8x16xf32> to vector<16x16xf32>
    %88 = vector.extract_strided_slice %33 {offsets = [0, 0], sizes = [16, 32], strides = [1, 1]} : vector<32x32xf32> to vector<16x32xf32>
    %cst_66 = arith.constant dense<0.000000e+00> : vector<16x32xf32>
    %89 = tpu.matmul %87, %88, %cst_66 {dimension_numbers = #tpu.dot_dimension_numbers<[1], [0], [0], [1], [0, 0, 1, 1], [], []>} : vector<16x16xf32>, vector<16x32xf32>, vector<16x32xf32> -> vector<16x32xf32>
    %90 = vector.extract_strided_slice %67 {offsets = [0, 0, 16], sizes = [2, 8, 16], strides = [1, 1, 1]} : vector<2x8x32xf32> to vector<2x8x16xf32>
    %91 = vector.extract_strided_slice %68 {offsets = [0, 0, 16], sizes = [2, 8, 16], strides = [1, 1, 1]} : vector<2x8x32xf32> to vector<2x8x16xf32>
    %92 = vector.extract_strided_slice %69 {offsets = [0, 0, 16], sizes = [2, 8, 16], strides = [1, 1, 1]} : vector<2x8x32xf32> to vector<2x8x16xf32>
    "tpu.trace_start"() <{level = 10 : i32, message = "bqd,bkd->bqk"}> : () -> ()
    %cst_67 = arith.constant dense<0.000000e+00> : vector<2x8x8xf32>
    %93 = tpu.matmul %90, %91, %cst_67 {dimension_numbers = #tpu.dot_dimension_numbers<[2], [2], [1], [1], [0, 0, 0, 1, 1, 1], [0], [0]>} : vector<2x8x16xf32>, vector<2x8x16xf32>, vector<2x8x8xf32> -> vector<2x8x8xf32>
    "tpu.trace_stop"() : () -> ()
    %cst_68 = arith.constant 2.500000e-01 : f32
    %94 = vector.broadcast %cst_68 : f32 to vector<2x8x8xf32>
    %95 = arith.mulf %93, %94 : vector<2x8x8xf32>
    %cst_69 = arith.constant dense<0xFF800000> : vector<2x8xf32>
    %96 = vector.multi_reduction <maximumf>, %95, %cst_69 [2] : vector<2x8x8xf32> to vector<2x8xf32>
    %97 = vector.shape_cast %96 : vector<2x8xf32> to vector<2x8x1xf32>
    %98 = vector.broadcast %97 : vector<2x8x1xf32> to vector<2x8x8xf32>
    %99 = arith.subf %95, %98 : vector<2x8x8xf32>
    %100 = math.exp %99 : vector<2x8x8xf32>
    %cst_70 = arith.constant dense<0.000000e+00> : vector<2x8xf32>
    %101 = vector.multi_reduction <add>, %100, %cst_70 [2] : vector<2x8x8xf32> to vector<2x8xf32>
    %102 = vector.shape_cast %101 : vector<2x8xf32> to vector<2x8x1xf32>
    %103 = tpu.reciprocal %102 {approx = true} : vector<2x8x1xf32> -> vector<2x8x1xf32>
    %104 = vector.broadcast %103 : vector<2x8x1xf32> to vector<2x8x8xf32>
    %105 = arith.mulf %100, %104 : vector<2x8x8xf32>
    "tpu.trace_start"() <{level = 10 : i32, message = "bqk,bkd->bqd"}> : () -> ()
    %cst_71 = arith.constant dense<0.000000e+00> : vector<2x8x16xf32>
    %106 = tpu.matmul %105, %92, %cst_71 {dimension_numbers = #tpu.dot_dimension_numbers<[2], [1], [1], [2], [0, 0, 0, 1, 1, 2], [0], [0]>} : vector<2x8x8xf32>, vector<2x8x16xf32>, vector<2x8x16xf32> -> vector<2x8x16xf32>
    "tpu.trace_stop"() : () -> ()
    %107 = vector.shape_cast %106 : vector<2x8x16xf32> to vector<16x16xf32>
    %108 = vector.extract_strided_slice %33 {offsets = [16, 0], sizes = [16, 32], strides = [1, 1]} : vector<32x32xf32> to vector<16x32xf32>
    %cst_72 = arith.constant dense<0.000000e+00> : vector<16x32xf32>
    %109 = tpu.matmul %107, %108, %cst_72 {dimension_numbers = #tpu.dot_dimension_numbers<[1], [0], [0], [1], [0, 0, 1, 1], [], []>} : vector<16x16xf32>, vector<16x32xf32>, vector<16x32xf32> -> vector<16x32xf32>
    %110 = arith.addf %89, %109 : vector<16x32xf32>
    %111 = vector.broadcast %41 : vector<1x32xf32> to vector<16x32xf32>
    %112 = arith.addf %110, %111 : vector<16x32xf32>
    %113 = arith.addf %25, %112 : vector<16x32xf32>
    %cst_73 = arith.constant dense<0.000000e+00> : vector<16xf32>
    %114 = vector.multi_reduction <add>, %113, %cst_73 [1] : vector<16x32xf32> to vector<16xf32>
    %115 = vector.shape_cast %114 : vector<16xf32> to vector<16x1xf32>
    %cst_74 = arith.constant 3.200000e+01 : f32
    %116 = vector.broadcast %cst_74 : f32 to vector<16x1xf32>
    %117 = arith.divf %115, %116 : vector<16x1xf32>
    %118 = vector.broadcast %117 : vector<16x1xf32> to vector<16x32xf32>
    %119 = arith.subf %113, %118 : vector<16x32xf32>
    %120 = arith.mulf %119, %119 : vector<16x32xf32>
    %cst_75 = arith.constant dense<0.000000e+00> : vector<16xf32>
    %121 = vector.multi_reduction <add>, %120, %cst_75 [1] : vector<16x32xf32> to vector<16xf32>
    %122 = vector.shape_cast %121 : vector<16xf32> to vector<16x1xf32>
    %cst_76 = arith.constant 3.200000e+01 : f32
    %123 = vector.broadcast %cst_76 : f32 to vector<16x1xf32>
    %124 = arith.divf %122, %123 : vector<16x1xf32>
    %125 = vector.broadcast %117 : vector<16x1xf32> to vector<16x32xf32>
    %126 = arith.subf %113, %125 : vector<16x32xf32>
    %cst_77 = arith.constant 9.99999996E-13 : f32
    %127 = vector.broadcast %cst_77 : f32 to vector<16x1xf32>
    %128 = arith.addf %124, %127 : vector<16x1xf32>
    %129 = math.rsqrt %128 : vector<16x1xf32>
    %130 = vector.broadcast %129 : vector<16x1xf32> to vector<16x32xf32>
    %131 = arith.mulf %126, %130 : vector<16x32xf32>
    %132 = vector.broadcast %43 : vector<1x32xf32> to vector<16x32xf32>
    %133 = arith.mulf %131, %132 : vector<16x32xf32>
    %134 = vector.broadcast %45 : vector<1x32xf32> to vector<16x32xf32>
    %135 = arith.addf %133, %134 : vector<16x32xf32>
    %cst_78 = arith.constant dense<0.000000e+00> : vector<16x64xf32>
    %136 = tpu.matmul %135, %47, %cst_78 {dimension_numbers = #tpu.dot_dimension_numbers<[1], [0], [0], [1], [0, 0, 1, 1], [], []>} : vector<16x32xf32>, vector<32x64xf32>, vector<16x64xf32> -> vector<16x64xf32>
    %137 = vector.broadcast %49 : vector<1x64xf32> to vector<16x64xf32>
    %138 = arith.addf %136, %137 : vector<16x64xf32>
    %cst_79 = arith.constant 5.000000e-01 : f32
    %139 = vector.broadcast %cst_79 : f32 to vector<16x64xf32>
    %140 = arith.mulf %139, %138 : vector<16x64xf32>
    %cst_80 = arith.constant 4.471500e-02 : f32
    %141 = vector.broadcast %cst_80 : f32 to vector<16x64xf32>
    %142 = arith.mulf %141, %138 : vector<16x64xf32>
    %143 = arith.mulf %142, %138 : vector<16x64xf32>
    %144 = arith.mulf %143, %138 : vector<16x64xf32>
    %145 = arith.addf %138, %144 : vector<16x64xf32>
    %cst_81 = arith.constant 0.797884583 : f32
    %146 = vector.broadcast %cst_81 : f32 to vector<16x64xf32>
    %147 = arith.mulf %146, %145 : vector<16x64xf32>
    %148 = math.tanh %147 : vector<16x64xf32>
    %cst_82 = arith.constant 1.000000e+00 : f32
    %149 = vector.broadcast %cst_82 : f32 to vector<16x64xf32>
    %150 = arith.addf %149, %148 : vector<16x64xf32>
    %151 = arith.mulf %140, %150 : vector<16x64xf32>
    %cst_83 = arith.constant dense<0.000000e+00> : vector<16x32xf32>
    %152 = tpu.matmul %151, %51, %cst_83 {dimension_numbers = #tpu.dot_dimension_numbers<[1], [0], [0], [1], [0, 0, 1, 1], [], []>} : vector<16x64xf32>, vector<64x32xf32>, vector<16x32xf32> -> vector<16x32xf32>
    %153 = vector.broadcast %53 : vector<1x32xf32> to vector<16x32xf32>
    %154 = arith.addf %152, %153 : vector<16x32xf32>
    %155 = arith.addf %135, %154 : vector<16x32xf32>
    %cst_84 = arith.constant dense<0.000000e+00> : vector<16xf32>
    %156 = vector.multi_reduction <add>, %155, %cst_84 [1] : vector<16x32xf32> to vector<16xf32>
    %157 = vector.shape_cast %156 : vector<16xf32> to vector<16x1xf32>
    %cst_85 = arith.constant 3.200000e+01 : f32
    %158 = vector.broadcast %cst_85 : f32 to vector<16x1xf32>
    %159 = arith.divf %157, %158 : vector<16x1xf32>
    %160 = vector.broadcast %159 : vector<16x1xf32> to vector<16x32xf32>
    %161 = arith.subf %155, %160 : vector<16x32xf32>
    %162 = arith.mulf %161, %161 : vector<16x32xf32>
    %cst_86 = arith.constant dense<0.000000e+00> : vector<16xf32>
    %163 = vector.multi_reduction <add>, %162, %cst_86 [1] : vector<16x32xf32> to vector<16xf32>
    %164 = vector.shape_cast %163 : vector<16xf32> to vector<16x1xf32>
    %cst_87 = arith.constant 3.200000e+01 : f32
    %165 = vector.broadcast %cst_87 : f32 to vector<16x1xf32>
    %166 = arith.divf %164, %165 : vector<16x1xf32>
    %167 = vector.broadcast %159 : vector<16x1xf32> to vector<16x32xf32>
    %168 = arith.subf %155, %167 : vector<16x32xf32>
    %cst_88 = arith.constant 9.99999996E-13 : f32
    %169 = vector.broadcast %cst_88 : f32 to vector<16x1xf32>
    %170 = arith.addf %166, %169 : vector<16x1xf32>
    %171 = math.rsqrt %170 : vector<16x1xf32>
    %172 = vector.broadcast %171 : vector<16x1xf32> to vector<16x32xf32>
    %173 = arith.mulf %168, %172 : vector<16x32xf32>
    %174 = vector.broadcast %55 : vector<1x32xf32> to vector<16x32xf32>
    %175 = arith.mulf %173, %174 : vector<16x32xf32>
    %176 = vector.broadcast %57 : vector<1x32xf32> to vector<16x32xf32>
    %177 = arith.addf %175, %176 : vector<16x32xf32>
    %c1 = arith.constant 1 : index
    %c0_89 = arith.constant 0 : index
    %c0_90 = arith.constant 0 : index
    %178 = vector.load %arg3[%c1, %c0_89, %c0_90] : memref<2x32x32xf32, #tpu.memory_space<vmem>>, vector<1x32x32xf32>
    %179 = vector.shape_cast %178 : vector<1x32x32xf32> to vector<32x32xf32>
    %c1_91 = arith.constant 1 : index
    %c0_92 = arith.constant 0 : index
    %c0_93 = arith.constant 0 : index
    %180 = vector.load %arg5[%c1_91, %c0_92, %c0_93] : memref<2x32x32xf32, #tpu.memory_space<vmem>>, vector<1x32x32xf32>
    %181 = vector.shape_cast %180 : vector<1x32x32xf32> to vector<32x32xf32>
    %c1_94 = arith.constant 1 : index
    %c0_95 = arith.constant 0 : index
    %c0_96 = arith.constant 0 : index
    %182 = vector.load %arg7[%c1_94, %c0_95, %c0_96] : memref<2x32x32xf32, #tpu.memory_space<vmem>>, vector<1x32x32xf32>
    %183 = vector.shape_cast %182 : vector<1x32x32xf32> to vector<32x32xf32>
    %c1_97 = arith.constant 1 : index
    %c0_98 = arith.constant 0 : index
    %c0_99 = arith.constant 0 : index
    %184 = vector.load %arg9[%c1_97, %c0_98, %c0_99] : memref<2x32x32xf32, #tpu.memory_space<vmem>>, vector<1x32x32xf32>
    %185 = vector.shape_cast %184 : vector<1x32x32xf32> to vector<32x32xf32>
    %c1_100 = arith.constant 1 : index
    %c0_101 = arith.constant 0 : index
    %c0_102 = arith.constant 0 : index
    %186 = vector.load %arg4[%c1_100, %c0_101, %c0_102] : memref<2x1x32xf32, #tpu.memory_space<vmem>>, vector<1x1x32xf32>
    %187 = vector.shape_cast %186 : vector<1x1x32xf32> to vector<1x32xf32>
    %c1_103 = arith.constant 1 : index
    %c0_104 = arith.constant 0 : index
    %c0_105 = arith.constant 0 : index
    %188 = vector.load %arg6[%c1_103, %c0_104, %c0_105] : memref<2x1x32xf32, #tpu.memory_space<vmem>>, vector<1x1x32xf32>
    %189 = vector.shape_cast %188 : vector<1x1x32xf32> to vector<1x32xf32>
    %c1_106 = arith.constant 1 : index
    %c0_107 = arith.constant 0 : index
    %c0_108 = arith.constant 0 : index
    %190 = vector.load %arg8[%c1_106, %c0_107, %c0_108] : memref<2x1x32xf32, #tpu.memory_space<vmem>>, vector<1x1x32xf32>
    %191 = vector.shape_cast %190 : vector<1x1x32xf32> to vector<1x32xf32>
    %c1_109 = arith.constant 1 : index
    %c0_110 = arith.constant 0 : index
    %c0_111 = arith.constant 0 : index
    %192 = vector.load %arg10[%c1_109, %c0_110, %c0_111] : memref<2x1x32xf32, #tpu.memory_space<vmem>>, vector<1x1x32xf32>
    %193 = vector.shape_cast %192 : vector<1x1x32xf32> to vector<1x32xf32>
    %c1_112 = arith.constant 1 : index
    %c0_113 = arith.constant 0 : index
    %c0_114 = arith.constant 0 : index
    %194 = vector.load %arg11[%c1_112, %c0_113, %c0_114] : memref<2x1x32xf32, #tpu.memory_space<vmem>>, vector<1x1x32xf32>
    %195 = vector.shape_cast %194 : vector<1x1x32xf32> to vector<1x32xf32>
    %c1_115 = arith.constant 1 : index
    %c0_116 = arith.constant 0 : index
    %c0_117 = arith.constant 0 : index
    %196 = vector.load %arg12[%c1_115, %c0_116, %c0_117] : memref<2x1x32xf32, #tpu.memory_space<vmem>>, vector<1x1x32xf32>
    %197 = vector.shape_cast %196 : vector<1x1x32xf32> to vector<1x32xf32>
    %c1_118 = arith.constant 1 : index
    %c0_119 = arith.constant 0 : index
    %c0_120 = arith.constant 0 : index
    %198 = vector.load %arg13[%c1_118, %c0_119, %c0_120] : memref<2x32x64xf32, #tpu.memory_space<vmem>>, vector<1x32x64xf32>
    %199 = vector.shape_cast %198 : vector<1x32x64xf32> to vector<32x64xf32>
    %c1_121 = arith.constant 1 : index
    %c0_122 = arith.constant 0 : index
    %c0_123 = arith.constant 0 : index
    %200 = vector.load %arg14[%c1_121, %c0_122, %c0_123] : memref<2x1x64xf32, #tpu.memory_space<vmem>>, vector<1x1x64xf32>
    %201 = vector.shape_cast %200 : vector<1x1x64xf32> to vector<1x64xf32>
    %c1_124 = arith.constant 1 : index
    %c0_125 = arith.constant 0 : index
    %c0_126 = arith.constant 0 : index
    %202 = vector.load %arg15[%c1_124, %c0_125, %c0_126] : memref<2x64x32xf32, #tpu.memory_space<vmem>>, vector<1x64x32xf32>
    %203 = vector.shape_cast %202 : vector<1x64x32xf32> to vector<64x32xf32>
    %c1_127 = arith.constant 1 : index
    %c0_128 = arith.constant 0 : index
    %c0_129 = arith.constant 0 : index
    %204 = vector.load %arg16[%c1_127, %c0_128, %c0_129] : memref<2x1x32xf32, #tpu.memory_space<vmem>>, vector<1x1x32xf32>
    %205 = vector.shape_cast %204 : vector<1x1x32xf32> to vector<1x32xf32>
    %c1_130 = arith.constant 1 : index
    %c0_131 = arith.constant 0 : index
    %c0_132 = arith.constant 0 : index
    %206 = vector.load %arg17[%c1_130, %c0_131, %c0_132] : memref<2x1x32xf32, #tpu.memory_space<vmem>>, vector<1x1x32xf32>
    %207 = vector.shape_cast %206 : vector<1x1x32xf32> to vector<1x32xf32>
    %c1_133 = arith.constant 1 : index
    %c0_134 = arith.constant 0 : index
    %c0_135 = arith.constant 0 : index
    %208 = vector.load %arg18[%c1_133, %c0_134, %c0_135] : memref<2x1x32xf32, #tpu.memory_space<vmem>>, vector<1x1x32xf32>
    %209 = vector.shape_cast %208 : vector<1x1x32xf32> to vector<1x32xf32>
    %cst_136 = arith.constant dense<0.000000e+00> : vector<16x32xf32>
    %210 = tpu.matmul %177, %179, %cst_136 {dimension_numbers = #tpu.dot_dimension_numbers<[1], [0], [0], [1], [0, 0, 1, 1], [], []>} : vector<16x32xf32>, vector<32x32xf32>, vector<16x32xf32> -> vector<16x32xf32>
    %211 = vector.broadcast %187 : vector<1x32xf32> to vector<16x32xf32>
    %212 = arith.addf %210, %211 : vector<16x32xf32>
    %cst_137 = arith.constant dense<0.000000e+00> : vector<16x32xf32>
    %213 = tpu.matmul %177, %181, %cst_137 {dimension_numbers = #tpu.dot_dimension_numbers<[1], [0], [0], [1], [0, 0, 1, 1], [], []>} : vector<16x32xf32>, vector<32x32xf32>, vector<16x32xf32> -> vector<16x32xf32>
    %214 = vector.broadcast %189 : vector<1x32xf32> to vector<16x32xf32>
    %215 = arith.addf %213, %214 : vector<16x32xf32>
    %cst_138 = arith.constant dense<0.000000e+00> : vector<16x32xf32>
    %216 = tpu.matmul %177, %183, %cst_138 {dimension_numbers = #tpu.dot_dimension_numbers<[1], [0], [0], [1], [0, 0, 1, 1], [], []>} : vector<16x32xf32>, vector<32x32xf32>, vector<16x32xf32> -> vector<16x32xf32>
    %217 = vector.broadcast %191 : vector<1x32xf32> to vector<16x32xf32>
    %218 = arith.addf %216, %217 : vector<16x32xf32>
    %219 = vector.shape_cast %212 : vector<16x32xf32> to vector<2x8x32xf32>
    %220 = vector.shape_cast %215 : vector<16x32xf32> to vector<2x8x32xf32>
    %221 = vector.shape_cast %218 : vector<16x32xf32> to vector<2x8x32xf32>
    %222 = vector.extract_strided_slice %219 {offsets = [0, 0, 0], sizes = [2, 8, 16], strides = [1, 1, 1]} : vector<2x8x32xf32> to vector<2x8x16xf32>
    %223 = vector.extract_strided_slice %220 {offsets = [0, 0, 0], sizes = [2, 8, 16], strides = [1, 1, 1]} : vector<2x8x32xf32> to vector<2x8x16xf32>
    %224 = vector.extract_strided_slice %221 {offsets = [0, 0, 0], sizes = [2, 8, 16], strides = [1, 1, 1]} : vector<2x8x32xf32> to vector<2x8x16xf32>
    "tpu.trace_start"() <{level = 10 : i32, message = "bqd,bkd->bqk"}> : () -> ()
    %cst_139 = arith.constant dense<0.000000e+00> : vector<2x8x8xf32>
    %225 = tpu.matmul %222, %223, %cst_139 {dimension_numbers = #tpu.dot_dimension_numbers<[2], [2], [1], [1], [0, 0, 0, 1, 1, 1], [0], [0]>} : vector<2x8x16xf32>, vector<2x8x16xf32>, vector<2x8x8xf32> -> vector<2x8x8xf32>
    "tpu.trace_stop"() : () -> ()
    %cst_140 = arith.constant 2.500000e-01 : f32
    %226 = vector.broadcast %cst_140 : f32 to vector<2x8x8xf32>
    %227 = arith.mulf %225, %226 : vector<2x8x8xf32>
    %cst_141 = arith.constant dense<0xFF800000> : vector<2x8xf32>
    %228 = vector.multi_reduction <maximumf>, %227, %cst_141 [2] : vector<2x8x8xf32> to vector<2x8xf32>
    %229 = vector.shape_cast %228 : vector<2x8xf32> to vector<2x8x1xf32>
    %230 = vector.broadcast %229 : vector<2x8x1xf32> to vector<2x8x8xf32>
    %231 = arith.subf %227, %230 : vector<2x8x8xf32>
    %232 = math.exp %231 : vector<2x8x8xf32>
    %cst_142 = arith.constant dense<0.000000e+00> : vector<2x8xf32>
    %233 = vector.multi_reduction <add>, %232, %cst_142 [2] : vector<2x8x8xf32> to vector<2x8xf32>
    %234 = vector.shape_cast %233 : vector<2x8xf32> to vector<2x8x1xf32>
    %235 = tpu.reciprocal %234 {approx = true} : vector<2x8x1xf32> -> vector<2x8x1xf32>
    %236 = vector.broadcast %235 : vector<2x8x1xf32> to vector<2x8x8xf32>
    %237 = arith.mulf %232, %236 : vector<2x8x8xf32>
    "tpu.trace_start"() <{level = 10 : i32, message = "bqk,bkd->bqd"}> : () -> ()
    %cst_143 = arith.constant dense<0.000000e+00> : vector<2x8x16xf32>
    %238 = tpu.matmul %237, %224, %cst_143 {dimension_numbers = #tpu.dot_dimension_numbers<[2], [1], [1], [2], [0, 0, 0, 1, 1, 2], [0], [0]>} : vector<2x8x8xf32>, vector<2x8x16xf32>, vector<2x8x16xf32> -> vector<2x8x16xf32>
    "tpu.trace_stop"() : () -> ()
    %239 = vector.shape_cast %238 : vector<2x8x16xf32> to vector<16x16xf32>
    %240 = vector.extract_strided_slice %185 {offsets = [0, 0], sizes = [16, 32], strides = [1, 1]} : vector<32x32xf32> to vector<16x32xf32>
    %cst_144 = arith.constant dense<0.000000e+00> : vector<16x32xf32>
    %241 = tpu.matmul %239, %240, %cst_144 {dimension_numbers = #tpu.dot_dimension_numbers<[1], [0], [0], [1], [0, 0, 1, 1], [], []>} : vector<16x16xf32>, vector<16x32xf32>, vector<16x32xf32> -> vector<16x32xf32>
    %242 = vector.extract_strided_slice %219 {offsets = [0, 0, 16], sizes = [2, 8, 16], strides = [1, 1, 1]} : vector<2x8x32xf32> to vector<2x8x16xf32>
    %243 = vector.extract_strided_slice %220 {offsets = [0, 0, 16], sizes = [2, 8, 16], strides = [1, 1, 1]} : vector<2x8x32xf32> to vector<2x8x16xf32>
    %244 = vector.extract_strided_slice %221 {offsets = [0, 0, 16], sizes = [2, 8, 16], strides = [1, 1, 1]} : vector<2x8x32xf32> to vector<2x8x16xf32>
    "tpu.trace_start"() <{level = 10 : i32, message = "bqd,bkd->bqk"}> : () -> ()
    %cst_145 = arith.constant dense<0.000000e+00> : vector<2x8x8xf32>
    %245 = tpu.matmul %242, %243, %cst_145 {dimension_numbers = #tpu.dot_dimension_numbers<[2], [2], [1], [1], [0, 0, 0, 1, 1, 1], [0], [0]>} : vector<2x8x16xf32>, vector<2x8x16xf32>, vector<2x8x8xf32> -> vector<2x8x8xf32>
    "tpu.trace_stop"() : () -> ()
    %cst_146 = arith.constant 2.500000e-01 : f32
    %246 = vector.broadcast %cst_146 : f32 to vector<2x8x8xf32>
    %247 = arith.mulf %245, %246 : vector<2x8x8xf32>
    %cst_147 = arith.constant dense<0xFF800000> : vector<2x8xf32>
    %248 = vector.multi_reduction <maximumf>, %247, %cst_147 [2] : vector<2x8x8xf32> to vector<2x8xf32>
    %249 = vector.shape_cast %248 : vector<2x8xf32> to vector<2x8x1xf32>
    %250 = vector.broadcast %249 : vector<2x8x1xf32> to vector<2x8x8xf32>
    %251 = arith.subf %247, %250 : vector<2x8x8xf32>
    %252 = math.exp %251 : vector<2x8x8xf32>
    %cst_148 = arith.constant dense<0.000000e+00> : vector<2x8xf32>
    %253 = vector.multi_reduction <add>, %252, %cst_148 [2] : vector<2x8x8xf32> to vector<2x8xf32>
    %254 = vector.shape_cast %253 : vector<2x8xf32> to vector<2x8x1xf32>
    %255 = tpu.reciprocal %254 {approx = true} : vector<2x8x1xf32> -> vector<2x8x1xf32>
    %256 = vector.broadcast %255 : vector<2x8x1xf32> to vector<2x8x8xf32>
    %257 = arith.mulf %252, %256 : vector<2x8x8xf32>
    "tpu.trace_start"() <{level = 10 : i32, message = "bqk,bkd->bqd"}> : () -> ()
    %cst_149 = arith.constant dense<0.000000e+00> : vector<2x8x16xf32>
    %258 = tpu.matmul %257, %244, %cst_149 {dimension_numbers = #tpu.dot_dimension_numbers<[2], [1], [1], [2], [0, 0, 0, 1, 1, 2], [0], [0]>} : vector<2x8x8xf32>, vector<2x8x16xf32>, vector<2x8x16xf32> -> vector<2x8x16xf32>
    "tpu.trace_stop"() : () -> ()
    %259 = vector.shape_cast %258 : vector<2x8x16xf32> to vector<16x16xf32>
    %260 = vector.extract_strided_slice %185 {offsets = [16, 0], sizes = [16, 32], strides = [1, 1]} : vector<32x32xf32> to vector<16x32xf32>
    %cst_150 = arith.constant dense<0.000000e+00> : vector<16x32xf32>
    %261 = tpu.matmul %259, %260, %cst_150 {dimension_numbers = #tpu.dot_dimension_numbers<[1], [0], [0], [1], [0, 0, 1, 1], [], []>} : vector<16x16xf32>, vector<16x32xf32>, vector<16x32xf32> -> vector<16x32xf32>
    %262 = arith.addf %241, %261 : vector<16x32xf32>
    %263 = vector.broadcast %193 : vector<1x32xf32> to vector<16x32xf32>
    %264 = arith.addf %262, %263 : vector<16x32xf32>
    %265 = arith.addf %177, %264 : vector<16x32xf32>
    %cst_151 = arith.constant dense<0.000000e+00> : vector<16xf32>
    %266 = vector.multi_reduction <add>, %265, %cst_151 [1] : vector<16x32xf32> to vector<16xf32>
    %267 = vector.shape_cast %266 : vector<16xf32> to vector<16x1xf32>
    %cst_152 = arith.constant 3.200000e+01 : f32
    %268 = vector.broadcast %cst_152 : f32 to vector<16x1xf32>
    %269 = arith.divf %267, %268 : vector<16x1xf32>
    %270 = vector.broadcast %269 : vector<16x1xf32> to vector<16x32xf32>
    %271 = arith.subf %265, %270 : vector<16x32xf32>
    %272 = arith.mulf %271, %271 : vector<16x32xf32>
    %cst_153 = arith.constant dense<0.000000e+00> : vector<16xf32>
    %273 = vector.multi_reduction <add>, %272, %cst_153 [1] : vector<16x32xf32> to vector<16xf32>
    %274 = vector.shape_cast %273 : vector<16xf32> to vector<16x1xf32>
    %cst_154 = arith.constant 3.200000e+01 : f32
    %275 = vector.broadcast %cst_154 : f32 to vector<16x1xf32>
    %276 = arith.divf %274, %275 : vector<16x1xf32>
    %277 = vector.broadcast %269 : vector<16x1xf32> to vector<16x32xf32>
    %278 = arith.subf %265, %277 : vector<16x32xf32>
    %cst_155 = arith.constant 9.99999996E-13 : f32
    %279 = vector.broadcast %cst_155 : f32 to vector<16x1xf32>
    %280 = arith.addf %276, %279 : vector<16x1xf32>
    %281 = math.rsqrt %280 : vector<16x1xf32>
    %282 = vector.broadcast %281 : vector<16x1xf32> to vector<16x32xf32>
    %283 = arith.mulf %278, %282 : vector<16x32xf32>
    %284 = vector.broadcast %195 : vector<1x32xf32> to vector<16x32xf32>
    %285 = arith.mulf %283, %284 : vector<16x32xf32>
    %286 = vector.broadcast %197 : vector<1x32xf32> to vector<16x32xf32>
    %287 = arith.addf %285, %286 : vector<16x32xf32>
    %cst_156 = arith.constant dense<0.000000e+00> : vector<16x64xf32>
    %288 = tpu.matmul %287, %199, %cst_156 {dimension_numbers = #tpu.dot_dimension_numbers<[1], [0], [0], [1], [0, 0, 1, 1], [], []>} : vector<16x32xf32>, vector<32x64xf32>, vector<16x64xf32> -> vector<16x64xf32>
    %289 = vector.broadcast %201 : vector<1x64xf32> to vector<16x64xf32>
    %290 = arith.addf %288, %289 : vector<16x64xf32>
    %cst_157 = arith.constant 5.000000e-01 : f32
    %291 = vector.broadcast %cst_157 : f32 to vector<16x64xf32>
    %292 = arith.mulf %291, %290 : vector<16x64xf32>
    %cst_158 = arith.constant 4.471500e-02 : f32
    %293 = vector.broadcast %cst_158 : f32 to vector<16x64xf32>
    %294 = arith.mulf %293, %290 : vector<16x64xf32>
    %295 = arith.mulf %294, %290 : vector<16x64xf32>
    %296 = arith.mulf %295, %290 : vector<16x64xf32>
    %297 = arith.addf %290, %296 : vector<16x64xf32>
    %cst_159 = arith.constant 0.797884583 : f32
    %298 = vector.broadcast %cst_159 : f32 to vector<16x64xf32>
    %299 = arith.mulf %298, %297 : vector<16x64xf32>
    %300 = math.tanh %299 : vector<16x64xf32>
    %cst_160 = arith.constant 1.000000e+00 : f32
    %301 = vector.broadcast %cst_160 : f32 to vector<16x64xf32>
    %302 = arith.addf %301, %300 : vector<16x64xf32>
    %303 = arith.mulf %292, %302 : vector<16x64xf32>
    %cst_161 = arith.constant dense<0.000000e+00> : vector<16x32xf32>
    %304 = tpu.matmul %303, %203, %cst_161 {dimension_numbers = #tpu.dot_dimension_numbers<[1], [0], [0], [1], [0, 0, 1, 1], [], []>} : vector<16x64xf32>, vector<64x32xf32>, vector<16x32xf32> -> vector<16x32xf32>
    %305 = vector.broadcast %205 : vector<1x32xf32> to vector<16x32xf32>
    %306 = arith.addf %304, %305 : vector<16x32xf32>
    %307 = arith.addf %287, %306 : vector<16x32xf32>
    %cst_162 = arith.constant dense<0.000000e+00> : vector<16xf32>
    %308 = vector.multi_reduction <add>, %307, %cst_162 [1] : vector<16x32xf32> to vector<16xf32>
    %309 = vector.shape_cast %308 : vector<16xf32> to vector<16x1xf32>
    %cst_163 = arith.constant 3.200000e+01 : f32
    %310 = vector.broadcast %cst_163 : f32 to vector<16x1xf32>
    %311 = arith.divf %309, %310 : vector<16x1xf32>
    %312 = vector.broadcast %311 : vector<16x1xf32> to vector<16x32xf32>
    %313 = arith.subf %307, %312 : vector<16x32xf32>
    %314 = arith.mulf %313, %313 : vector<16x32xf32>
    %cst_164 = arith.constant dense<0.000000e+00> : vector<16xf32>
    %315 = vector.multi_reduction <add>, %314, %cst_164 [1] : vector<16x32xf32> to vector<16xf32>
    %316 = vector.shape_cast %315 : vector<16xf32> to vector<16x1xf32>
    %cst_165 = arith.constant 3.200000e+01 : f32
    %317 = vector.broadcast %cst_165 : f32 to vector<16x1xf32>
    %318 = arith.divf %316, %317 : vector<16x1xf32>
    %319 = vector.broadcast %311 : vector<16x1xf32> to vector<16x32xf32>
    %320 = arith.subf %307, %319 : vector<16x32xf32>
    %cst_166 = arith.constant 9.99999996E-13 : f32
    %321 = vector.broadcast %cst_166 : f32 to vector<16x1xf32>
    %322 = arith.addf %318, %321 : vector<16x1xf32>
    %323 = math.rsqrt %322 : vector<16x1xf32>
    %324 = vector.broadcast %323 : vector<16x1xf32> to vector<16x32xf32>
    %325 = arith.mulf %320, %324 : vector<16x32xf32>
    %326 = vector.broadcast %207 : vector<1x32xf32> to vector<16x32xf32>
    %327 = arith.mulf %325, %326 : vector<16x32xf32>
    %328 = vector.broadcast %209 : vector<1x32xf32> to vector<16x32xf32>
    %329 = arith.addf %327, %328 : vector<16x32xf32>
    %330 = vector.shape_cast %329 : vector<16x32xf32> to vector<2x8x32xf32>
    %cst_167 = arith.constant dense<0.000000e+00> : vector<2x32xf32>
    %331 = vector.multi_reduction <add>, %330, %cst_167 [1] : vector<2x8x32xf32> to vector<2x32xf32>
    %cst_168 = arith.constant 8.000000e+00 : f32
    %332 = vector.broadcast %cst_168 : f32 to vector<2x32xf32>
    %333 = arith.divf %331, %332 : vector<2x32xf32>
    %c0_169 = arith.constant 0 : index
    %c0_170 = arith.constant 0 : index
    %334 = vector.load %arg19[%c0_169, %c0_170] : memref<2x32xf32, #tpu.memory_space<vmem>>, vector<2x32xf32>
    tpu.vector_store %arg19[%c0_169, %c0_170], %333 {strides = array<i32>} : memref<2x32xf32, #tpu.memory_space<vmem>>, vector<2x32xf32>,
    return
  }
}

</mosaic_0001>

<llo_original>
// kernel: _encoder_bert_forward.1
$region0: #{_encoder_bert_forward.1}
  #allocation0 [shape = 'u32[]', space=smem, size = 0x4, offset = 0x4, fixed_abs, tag = 'smem constant byte address 0x4 - core index']
  #allocation1 [shape = 'u32[72,128]{1,0:T(1,128)}', space=vmem, size = 0x9000, scoped, tag = 'internal scratch']
  %s0 = inlined_call_operand.vmem [shape: f32[2,8,32], index: 0, kind: input, shape index: {}]
  %s1 = inlined_call_operand.vmem [shape: f32[1,32], index: 1, kind: input, shape index: {}]
  %s2 = inlined_call_operand.vmem [shape: f32[1,32], index: 2, kind: input, shape index: {}]
  %s3 = inlined_call_operand.vmem [shape: f32[2,32,32], index: 3, kind: input, shape index: {}]
  %s4 = inlined_call_operand.vmem [shape: f32[2,1,32], index: 4, kind: input, shape index: {}]
  %s5 = inlined_call_operand.vmem [shape: f32[2,32,32], index: 5, kind: input, shape index: {}]
  %s6 = inlined_call_operand.vmem [shape: f32[2,1,32], index: 6, kind: input, shape index: {}]
  %s7 = inlined_call_operand.vmem [shape: f32[2,32,32], index: 7, kind: input, shape index: {}]
  %s8 = inlined_call_operand.vmem [shape: f32[2,1,32], index: 8, kind: input, shape index: {}]
  %s9 = inlined_call_operand.vmem [shape: f32[2,32,32], index: 9, kind: input, shape index: {}]
  %s10 = inlined_call_operand.vmem [shape: f32[2,1,32], index: 10, kind: input, shape index: {}]
  %s11 = inlined_call_operand.vmem [shape: f32[2,1,32], index: 11, kind: input, shape index: {}]
  %s12 = inlined_call_operand.vmem [shape: f32[2,1,32], index: 12, kind: input, shape index: {}]
  %s13 = inlined_call_operand.vmem [shape: f32[2,32,64], index: 13, kind: input, shape index: {}]
  %s14 = inlined_call_operand.vmem [shape: f32[2,1,64], index: 14, kind: input, shape index: {}]
  %s15 = inlined_call_operand.vmem [shape: f32[2,64,32], index: 15, kind: input, shape index: {}]
  %s16 = inlined_call_operand.vmem [shape: f32[2,1,32], index: 16, kind: input, shape index: {}]
  %s17 = inlined_call_operand.vmem [shape: f32[2,1,32], index: 17, kind: input, shape index: {}]
  %s18 = inlined_call_operand.vmem [shape: f32[2,1,32], index: 18, kind: input, shape index: {}]
  %s19 = inlined_call_operand.hbm [shape: f32[2,32], index: 19, kind: output, shape index: {}]
  %s20 = sld [smem:[#allocation0]]
  $region86: #{_encoder_bert_forward.1} parent=0
    _
  %s22 = ssub.s32 1, %s20
  %s23 = scalar_select 0, %s22, %s20
  $region1: #{_encoder_bert_forward.1} parent=0
    #allocation2 [shape = 'u8[1024]{0}', space=vmem, size = 0x400, scoped, tag = 'output window, operand 0, single buffered']
    #allocation3 [shape = 's32[1]{0}', space=sflag, size = 0x4, scoped, tag = 'scoped memory for _encoder_bert_forward.1']
    %24 = vsyncpa [#allocation3], 0
    // Predicated region
    $region2: #{_encoder_bert_forward.1} parent=1 // pred_check
      _
    $region3: #{_encoder_bert_forward.1} parent=1 // pred_check_branch
      %26 = sbr.rel (0) target = $region5
    $region4: #{_encoder_bert_forward.1} parent=1 // pred_region
      _
    $region5: #{_encoder_bert_forward.1} parent=1 // pred_fallthru
      _
    // Predicated region
    $region6: #{_encoder_bert_forward.1} parent=1 // pred_check
      _
    $region7: #{_encoder_bert_forward.1} parent=1 // pred_check_branch
      %28 = sbr.rel (0) target = $region9
    $region8: #{_encoder_bert_forward.1} parent=1 // pred_region
      _
    $region9: #{_encoder_bert_forward.1} parent=1 // pred_fallthru
      _
    // Predicated region
    $region10: #{_encoder_bert_forward.1} parent=1 // pred_check
      _
    $region11: #{_encoder_bert_forward.1} parent=1 // pred_check_branch
      %30 = sbr.rel (0) target = $region13
    $region12: #{_encoder_bert_forward.1} parent=1 // pred_region
      _
    $region13: #{_encoder_bert_forward.1} parent=1 // pred_fallthru
      _
    // Predicated region
    $region14: #{_encoder_bert_forward.1} parent=1 // pred_check
      _
    $region15: #{_encoder_bert_forward.1} parent=1 // pred_check_branch
      %32 = sbr.rel (0) target = $region17
    $region16: #{_encoder_bert_forward.1} parent=1 // pred_region
      _
    $region17: #{_encoder_bert_forward.1} parent=1 // pred_fallthru
      _
    // Predicated region
    $region18: #{_encoder_bert_forward.1} parent=1 // pred_check
      _
    $region19: #{_encoder_bert_forward.1} parent=1 // pred_check_branch
      %34 = sbr.rel (0) target = $region21
    $region20: #{_encoder_bert_forward.1} parent=1 // pred_region
      _
    $region21: #{_encoder_bert_forward.1} parent=1 // pred_fallthru
      _
    // Predicated region
    $region22: #{_encoder_bert_forward.1} parent=1 // pred_check
      _
    $region23: #{_encoder_bert_forward.1} parent=1 // pred_check_branch
      %36 = sbr.rel (0) target = $region25
    $region24: #{_encoder_bert_forward.1} parent=1 // pred_region
      _
    $region25: #{_encoder_bert_forward.1} parent=1 // pred_fallthru
      _
    // Predicated region
    $region26: #{_encoder_bert_forward.1} parent=1 // pred_check
      _
    $region27: #{_encoder_bert_forward.1} parent=1 // pred_check_branch
      %38 = sbr.rel (0) target = $region29
    $region28: #{_encoder_bert_forward.1} parent=1 // pred_region
      _
    $region29: #{_encoder_bert_forward.1} parent=1 // pred_fallthru
      _
    // Predicated region
    $region30: #{_encoder_bert_forward.1} parent=1 // pred_check
      _
    $region31: #{_encoder_bert_forward.1} parent=1 // pred_check_branch
      %40 = sbr.rel (0) target = $region33
    $region32: #{_encoder_bert_forward.1} parent=1 // pred_region
      _
    $region33: #{_encoder_bert_forward.1} parent=1 // pred_fallthru
      _
    // Predicated region
    $region34: #{_encoder_bert_forward.1} parent=1 // pred_check
      _
    $region35: #{_encoder_bert_forward.1} parent=1 // pred_check_branch
      %42 = sbr.rel (0) target = $region37
    $region36: #{_encoder_bert_forward.1} parent=1 // pred_region
      _
    $region37: #{_encoder_bert_forward.1} parent=1 // pred_fallthru
      _
    // Predicated region
    $region38: #{_encoder_bert_forward.1} parent=1 // pred_check
      _
    $region39: #{_encoder_bert_forward.1} parent=1 // pred_check_branch
      %44 = sbr.rel (0) target = $region41
    $region40: #{_encoder_bert_forward.1} parent=1 // pred_region
      _
    $region41: #{_encoder_bert_forward.1} parent=1 // pred_fallthru
      _
    // Predicated region
    $region42: #{_encoder_bert_forward.1} parent=1 // pred_check
      _
    $region43: #{_encoder_bert_forward.1} parent=1 // pred_check_branch
      %46 = sbr.rel (0) target = $region45
    $region44: #{_encoder_bert_forward.1} parent=1 // pred_region
      _
    $region45: #{_encoder_bert_forward.1} parent=1 // pred_fallthru
      _
    // Predicated region
    $region46: #{_encoder_bert_forward.1} parent=1 // pred_check
      _
    $region47: #{_encoder_bert_forward.1} parent=1 // pred_check_branch
      %48 = sbr.rel (0) target = $region49
    $region48: #{_encoder_bert_forward.1} parent=1 // pred_region
      _
    $region49: #{_encoder_bert_forward.1} parent=1 // pred_fallthru
      _
    // Predicated region
    $region50: #{_encoder_bert_forward.1} parent=1 // pred_check
      _
    $region51: #{_encoder_bert_forward.1} parent=1 // pred_check_branch
      %50 = sbr.rel (0) target = $region53
    $region52: #{_encoder_bert_forward.1} parent=1 // pred_region
      _
    $region53: #{_encoder_bert_forward.1} parent=1 // pred_fallthru
      _
    // Predicated region
    $region54: #{_encoder_bert_forward.1} parent=1 // pred_check
      _
    $region55: #{_encoder_bert_forward.1} parent=1 // pred_check_branch
      %52 = sbr.rel (0) target = $region57
    $region56: #{_encoder_bert_forward.1} parent=1 // pred_region
      _
    $region57: #{_encoder_bert_forward.1} parent=1 // pred_fallthru
      _
    // Predicated region
    $region58: #{_encoder_bert_forward.1} parent=1 // pred_check
      _
    $region59: #{_encoder_bert_forward.1} parent=1 // pred_check_branch
      %54 = sbr.rel (0) target = $region61
    $region60: #{_encoder_bert_forward.1} parent=1 // pred_region
      _
    $region61: #{_encoder_bert_forward.1} parent=1 // pred_fallthru
      _
    // Predicated region
    $region62: #{_encoder_bert_forward.1} parent=1 // pred_check
      _
    $region63: #{_encoder_bert_forward.1} parent=1 // pred_check_branch
      %56 = sbr.rel (0) target = $region65
    $region64: #{_encoder_bert_forward.1} parent=1 // pred_region
      _
    $region65: #{_encoder_bert_forward.1} parent=1 // pred_fallthru
      _
    // Predicated region
    $region66: #{_encoder_bert_forward.1} parent=1 // pred_check
      _
    $region67: #{_encoder_bert_forward.1} parent=1 // pred_check_branch
      %58 = sbr.rel (0) target = $region69
    $region68: #{_encoder_bert_forward.1} parent=1 // pred_region
      _
    $region69: #{_encoder_bert_forward.1} parent=1 // pred_fallthru
      _
    // Predicated region
    $region70: #{_encoder_bert_forward.1} parent=1 // pred_check
      _
    $region71: #{_encoder_bert_forward.1} parent=1 // pred_check_branch
      %60 = sbr.rel (0) target = $region73
    $region72: #{_encoder_bert_forward.1} parent=1 // pred_region
      _
    $region73: #{_encoder_bert_forward.1} parent=1 // pred_fallthru
      _
    // Predicated region
    $region74: #{_encoder_bert_forward.1} parent=1 // pred_check
      _
    $region75: #{_encoder_bert_forward.1} parent=1 // pred_check_branch
      %62 = sbr.rel (0) target = $region77
    $region76: #{_encoder_bert_forward.1} parent=1 // pred_region
      _
    $region77: #{_encoder_bert_forward.1} parent=1 // pred_fallthru
      _
    %v63 = vld [vmem:[%s0] sm:$0xff]
    %v64 = vld [vmem:[%s0 + $0x8] sm:$0xff]
    %v65 = vld [vmem:[%s1] sm:$0x1]
    %v66 = vld [vmem:[%s2] sm:$0x1]
    %vm67 = vcmask 261120
    %v68 = vsel %vm67, %v63, 0.0
    %69 = vadd.xlane.f32.xlu0 %v68
    %v70 = vpop.xlane.xlu0 %69
    %v71 = vsel %vm67, %v64, 0.0
    %72 = vadd.xlane.f32.xlu0 %v71
    %v73 = vpop.xlane.xlu0 %72
    %v74 = vrcp.pop 32.0
    %v75 = vmul.f32 32.0, %v74
    %v76 = vsub.f32 1.0, %v75
    %v77 = vmul.f32 %v74, %v76
    %v78 = vadd.f32 %v74, %v77
    %vm79 = vweird.f32 %v74
    %v80 = vsel %vm79, %v74, %v78
    %v81 = vmul.f32 %v70, %v80
    %v82 = vmul.f32 %v73, %v80
    %v83 = vsub.f32 %v63, %v81
    %v84 = vsub.f32 %v64, %v82
    %v85 = vmul.f32 %v83, %v83
    %v86 = vmul.f32 %v84, %v84
    %v87 = vsel %vm67, %v85, 0.0
    %88 = vadd.xlane.f32.xlu0 %v87
    %v89 = vpop.xlane.xlu0 %88
    %v90 = vsel %vm67, %v86, 0.0
    %91 = vadd.xlane.f32.xlu0 %v90
    %v92 = vpop.xlane.xlu0 %91
    %v93 = vmul.f32 %v89, %v80
    %v94 = vmul.f32 %v92, %v80
    %v95 = vadd.f32 %v93, 1e-12
    %v96 = vadd.f32 %v94, 1e-12
    %v97 = vrsqrt.pop %v95
    %v98 = vmul.f32 %v97, %v95
    %v99 = vmul.f32 %v98, %v97
    %v100 = vmul.f32 0.5, %v99
    %v101 = vsub.f32 1.5, %v100
    %v102 = vmul.f32 %v97, %v101
    %vm103 = vweird.f32 %v95
    %vm104 = vweird.f32 %v97
    %vm105 = vmor %vm103, %vm104
    %v106 = vsel %vm105, %v97, %v102
    %v107 = vrsqrt.pop %v96
    %v108 = vmul.f32 %v107, %v96
    %v109 = vmul.f32 %v108, %v107
    %v110 = vmul.f32 0.5, %v109
    %v111 = vsub.f32 1.5, %v110
    %v112 = vmul.f32 %v107, %v111
    %vm113 = vweird.f32 %v96
    %vm114 = vweird.f32 %v107
    %vm115 = vmor %vm113, %vm114
    %v116 = vsel %vm115, %v107, %v112
    %v117 = vmul.f32 %v83, %v106
    %v118 = vmul.f32 %v84, %v116
    %v120 = vperm.slane %v65, 0
    %v122 = vmul.f32 %v117, %v120
    %v123 = vmul.f32 %v118, %v120
    %v125 = vperm.slane %v66, 0
    %v127 = vadd.f32 %v122, %v125
    %v128 = vadd.f32 %v123, %v125
    %v129 = vld [vmem:[%s3] sm:$0xff]
    %v130 = vld [vmem:[%s3 + $0x8] sm:$0xff]
    %v131 = vld [vmem:[%s3 + $0x10] sm:$0xff]
    %v132 = vld [vmem:[%s3 + $0x18] sm:$0xff]
    %v133 = vld [vmem:[%s5] sm:$0xff]
    %v134 = vld [vmem:[%s5 + $0x8] sm:$0xff]
    %v135 = vld [vmem:[%s5 + $0x10] sm:$0xff]
    %v136 = vld [vmem:[%s5 + $0x18] sm:$0xff]
    %v137 = vld [vmem:[%s7] sm:$0xff]
    %v138 = vld [vmem:[%s7 + $0x8] sm:$0xff]
    %v139 = vld [vmem:[%s7 + $0x10] sm:$0xff]
    %v140 = vld [vmem:[%s7 + $0x18] sm:$0xff]
    %v141 = vld [vmem:[%s9] sm:$0xff]
    %v142 = vld [vmem:[%s9 + $0x8] sm:$0xff]
    %v143 = vld [vmem:[%s9 + $0x10] sm:$0xff]
    %v144 = vld [vmem:[%s9 + $0x18] sm:$0xff]
    %v145 = vld [vmem:[%s4] sm:$0x1]
    %v146 = vld [vmem:[%s6] sm:$0x1]
    %v147 = vld [vmem:[%s8] sm:$0x1]
    %v148 = vld [vmem:[%s10] sm:$0x1]
    %v149 = vld [vmem:[%s11] sm:$0x1]
    %v150 = vld [vmem:[%s12] sm:$0x1]
    %v151 = vld [vmem:[%s13] sm:$0xff]
    %v152 = vld [vmem:[%s13 + $0x8] sm:$0xff]
    %v153 = vld [vmem:[%s13 + $0x10] sm:$0xff]
    %v154 = vld [vmem:[%s13 + $0x18] sm:$0xff]
    %v155 = vld [vmem:[%s14] sm:$0x1]
    %v156 = vld [vmem:[%s15] sm:$0xff]
    %v157 = vld [vmem:[%s15 + $0x8] sm:$0xff]
    %v158 = vld [vmem:[%s15 + $0x10] sm:$0xff]
    %v159 = vld [vmem:[%s15 + $0x18] sm:$0xff]
    %v160 = vld [vmem:[%s15 + $0x20] sm:$0xff]
    %v161 = vld [vmem:[%s15 + $0x28] sm:$0xff]
    %v162 = vld [vmem:[%s15 + $0x30] sm:$0xff]
    %v163 = vld [vmem:[%s15 + $0x38] sm:$0xff]
    %v164 = vld [vmem:[%s16] sm:$0x1]
    %v165 = vld [vmem:[%s17] sm:$0x1]
    %v166 = vld [vmem:[%s18] sm:$0x1]
    %v168 = vperm.slane %v145, 0
    %v171 = vsel %vm67, %v127, 0
    %v174 = vsel %vm67, %v128, 0
    %176 = vmatpush.msra.mxu0 0.0
    %177 = vmatpush.msra.mxu0 0.0
    %178 = vmatpush.msra.mxu0 0.0
    %179 = vmatpush.msra.mxu0 0.0
    %180 = vmatpush.msra.mxu0 0.0
    %181 = vmatpush.msra.mxu0 0.0
    %182 = vmatpush.msra.mxu0 0.0
    %183 = vmatpush.msra.mxu0 0.0
    %184 = vmatpush.msra.mxu0 0.0
    %185 = vmatpush.msra.mxu0 0.0
    %186 = vmatpush.msra.mxu0 0.0
    %187 = vmatpush.msra.mxu0 0.0
    %188 = vmatpush.msra.mxu0 %v132
    %189 = vmatpush.msra.mxu0 %v131
    %190 = vmatpush.msra.mxu0 %v130
    %191 = vmatpush.msra.mxu0 %v129
    %192 = vmatmul.f32.gmra.mxu0 %v171
    %v193 = vpop.f32.mrf.mxu0
    %v194 = vadd.f32 %v168, %v193
    %195 = vmatmul.f32.gmra.mxu0 %v174
    %v196 = vpop.f32.mrf.mxu0
    %v197 = vadd.f32 %v168, %v196
    %198 = vdwg.mxu0
    %v200 = vperm.slane %v146, 0
    %202 = vmatpush.msra.mxu0 0.0
    %203 = vmatpush.msra.mxu0 0.0
    %204 = vmatpush.msra.mxu0 0.0
    %205 = vmatpush.msra.mxu0 0.0
    %206 = vmatpush.msra.mxu0 0.0
    %207 = vmatpush.msra.mxu0 0.0
    %208 = vmatpush.msra.mxu0 0.0
    %209 = vmatpush.msra.mxu0 0.0
    %210 = vmatpush.msra.mxu0 0.0
    %211 = vmatpush.msra.mxu0 0.0
    %212 = vmatpush.msra.mxu0 0.0
    %213 = vmatpush.msra.mxu0 0.0
    %214 = vmatpush.msra.mxu0 %v136
    %215 = vmatpush.msra.mxu0 %v135
    %216 = vmatpush.msra.mxu0 %v134
    %217 = vmatpush.msra.mxu0 %v133
    %218 = vmatmul.f32.gmra.mxu0 %v171
    %v219 = vpop.f32.mrf.mxu0
    %v220 = vadd.f32 %v200, %v219
    %221 = vmatmul.f32.gmra.mxu0 %v174
    %v222 = vpop.f32.mrf.mxu0
    %v223 = vadd.f32 %v200, %v222
    %224 = vdwg.mxu0
    %v226 = vperm.slane %v147, 0
    %228 = vmatpush.msra.mxu0 0.0
    %229 = vmatpush.msra.mxu0 0.0
    %230 = vmatpush.msra.mxu0 0.0
    %231 = vmatpush.msra.mxu0 0.0
    %232 = vmatpush.msra.mxu0 0.0
    %233 = vmatpush.msra.mxu0 0.0
    %234 = vmatpush.msra.mxu0 0.0
    %235 = vmatpush.msra.mxu0 0.0
    %236 = vmatpush.msra.mxu0 0.0
    %237 = vmatpush.msra.mxu0 0.0
    %238 = vmatpush.msra.mxu0 0.0
    %239 = vmatpush.msra.mxu0 0.0
    %240 = vmatpush.msra.mxu0 %v140
    %241 = vmatpush.msra.mxu0 %v139
    %242 = vmatpush.msra.mxu0 %v138
    %243 = vmatpush.msra.mxu0 %v137
    %244 = vmatmul.f32.gmra.mxu0 %v171
    %v245 = vpop.f32.mrf.mxu0
    %v246 = vadd.f32 %v226, %v245
    %247 = vmatmul.f32.gmra.mxu0 %v174
    %v248 = vpop.f32.mrf.mxu0
    %v249 = vadd.f32 %v226, %v248
    %250 = vdwg.mxu0
    %vm251 = vcmask 130048
    %v253 = vsel %vm251, %v194, 0
    %v256 = vsel %vm251, %v220, 0
    %258 = vmatpush.xpose.msra.mxu0 0.0
    %259 = vmatpush.xpose.msra.mxu0 0.0
    %260 = vmatpush.xpose.msra.mxu0 0.0
    %261 = vmatpush.xpose.msra.mxu0 0.0
    %262 = vmatpush.xpose.msra.mxu0 0.0
    %263 = vmatpush.xpose.msra.mxu0 0.0
    %264 = vmatpush.xpose.msra.mxu0 0.0
    %265 = vmatpush.xpose.msra.mxu0 0.0
    %266 = vmatpush.xpose.msra.mxu0 0.0
    %267 = vmatpush.xpose.msra.mxu0 0.0
    %268 = vmatpush.xpose.msra.mxu0 0.0
    %269 = vmatpush.xpose.msra.mxu0 0.0
    %270 = vmatpush.xpose.msra.mxu0 0.0
    %271 = vmatpush.xpose.msra.mxu0 0.0
    %272 = vmatpush.xpose.msra.mxu0 0.0
    %273 = vmatpush.xpose.msra.mxu0 %v256
    %274 = vmatmul.f32.gmra.mxu0 %v253
    %v275 = vpop.f32.mrf.mxu0
    %v276 = vadd.f32 0.0, %v275
    %277 = vdwg.mxu0
    %v279 = vsel %vm251, %v197, 0
    %v282 = vsel %vm251, %v223, 0
    %284 = vmatpush.xpose.msra.mxu0 0.0
    %285 = vmatpush.xpose.msra.mxu0 0.0
    %286 = vmatpush.xpose.msra.mxu0 0.0
    %287 = vmatpush.xpose.msra.mxu0 0.0
    %288 = vmatpush.xpose.msra.mxu0 0.0
    %289 = vmatpush.xpose.msra.mxu0 0.0
    %290 = vmatpush.xpose.msra.mxu0 0.0
    %291 = vmatpush.xpose.msra.mxu0 0.0
    %292 = vmatpush.xpose.msra.mxu0 0.0
    %293 = vmatpush.xpose.msra.mxu0 0.0
    %294 = vmatpush.xpose.msra.mxu0 0.0
    %295 = vmatpush.xpose.msra.mxu0 0.0
    %296 = vmatpush.xpose.msra.mxu0 0.0
    %297 = vmatpush.xpose.msra.mxu0 0.0
    %298 = vmatpush.xpose.msra.mxu0 0.0
    %299 = vmatpush.xpose.msra.mxu0 %v282
    %300 = vmatmul.f32.gmra.mxu0 %v279
    %v301 = vpop.f32.mrf.mxu0
    %v302 = vadd.f32 0.0, %v301
    %303 = vdwg.mxu0
    %v304 = vmul.f32 %v276, 0.25
    %v305 = vmul.f32 %v302, 0.25
    %vm306 = vcmask 64512
    %v307 = vsel %vm306, %v304, -inf
    %308 = vmax.xlane.f32.xlu0 %v307
    %v309 = vpop.xlane.xlu0 %308
    %v310 = vsel %vm306, %v305, -inf
    %311 = vmax.xlane.f32.xlu0 %v310
    %v312 = vpop.xlane.xlu0 %311
    %v313 = vsub.f32 %v304, %v309
    %v314 = vsub.f32 %v305, %v312
    %v315 = vmul.f32 %v313, 1.442695
    %v316 = vpow.pop %v315
    %v317 = vmul.f32 %v314, 1.442695
    %v318 = vpow.pop %v317
    %v319 = vsel %vm306, %v316, 0.0
    %320 = vadd.xlane.f32.xlu0 %v319
    %v321 = vpop.xlane.xlu0 %320
    %v322 = vsel %vm306, %v318, 0.0
    %323 = vadd.xlane.f32.xlu0 %v322
    %v324 = vpop.xlane.xlu0 %323
    %v325 = vrcp.pop %v321
    %v326 = vrcp.pop %v324
    %v327 = vmul.f32 %v316, %v325
    %v328 = vmul.f32 %v318, %v326
    %v330 = vsel %vm306, %v327, 0
    %332 = vmatpush.msra.mxu0 0.0
    %333 = vmatpush.msra.mxu0 0.0
    %334 = vmatpush.msra.mxu0 0.0
    %335 = vmatpush.msra.mxu0 0.0
    %336 = vmatpush.msra.mxu0 0.0
    %337 = vmatpush.msra.mxu0 0.0
    %338 = vmatpush.msra.mxu0 0.0
    %339 = vmatpush.msra.mxu0 0.0
    %340 = vmatpush.msra.mxu0 0.0
    %341 = vmatpush.msra.mxu0 0.0
    %342 = vmatpush.msra.mxu0 0.0
    %343 = vmatpush.msra.mxu0 0.0
    %344 = vmatpush.msra.mxu0 0.0
    %345 = vmatpush.msra.mxu0 0.0
    %346 = vmatpush.msra.mxu0 0.0
    %347 = vmatpush.msra.mxu0 %v246
    %348 = vmatmul.f32.gmra.mxu0 %v330
    %v349 = vpop.f32.mrf.mxu0
    %v350 = vadd.f32 0.0, %v349
    %351 = vdwg.mxu0
    %v353 = vsel %vm306, %v328, 0
    %355 = vmatpush.msra.mxu0 0.0
    %356 = vmatpush.msra.mxu0 0.0
    %357 = vmatpush.msra.mxu0 0.0
    %358 = vmatpush.msra.mxu0 0.0
    %359 = vmatpush.msra.mxu0 0.0
    %360 = vmatpush.msra.mxu0 0.0
    %361 = vmatpush.msra.mxu0 0.0
    %362 = vmatpush.msra.mxu0 0.0
    %363 = vmatpush.msra.mxu0 0.0
    %364 = vmatpush.msra.mxu0 0.0
    %365 = vmatpush.msra.mxu0 0.0
    %366 = vmatpush.msra.mxu0 0.0
    %367 = vmatpush.msra.mxu0 0.0
    %368 = vmatpush.msra.mxu0 0.0
    %369 = vmatpush.msra.mxu0 0.0
    %370 = vmatpush.msra.mxu0 %v249
    %371 = vmatmul.f32.gmra.mxu0 %v353
    %v372 = vpop.f32.mrf.mxu0
    %v373 = vadd.f32 0.0, %v372
    %374 = vdwg.mxu0
    %375 = vrot.lane.b32.xlu0 %v194, 112
    %v376 = vpop.permute.xlu0 %375
    %377 = vrot.lane.b32.xlu0 %v220, 112
    %v378 = vpop.permute.xlu0 %377
    %v379 = vsel %vm251, %v376, 0
    %v381 = vsel %vm251, %v378, 0
    %383 = vmatpush.xpose.msra.mxu0 0.0
    %384 = vmatpush.xpose.msra.mxu0 0.0
    %385 = vmatpush.xpose.msra.mxu0 0.0
    %386 = vmatpush.xpose.msra.mxu0 0.0
    %387 = vmatpush.xpose.msra.mxu0 0.0
    %388 = vmatpush.xpose.msra.mxu0 0.0
    %389 = vmatpush.xpose.msra.mxu0 0.0
    %390 = vmatpush.xpose.msra.mxu0 0.0
    %391 = vmatpush.xpose.msra.mxu0 0.0
    %392 = vmatpush.xpose.msra.mxu0 0.0
    %393 = vmatpush.xpose.msra.mxu0 0.0
    %394 = vmatpush.xpose.msra.mxu0 0.0
    %395 = vmatpush.xpose.msra.mxu0 0.0
    %396 = vmatpush.xpose.msra.mxu0 0.0
    %397 = vmatpush.xpose.msra.mxu0 0.0
    %398 = vmatpush.xpose.msra.mxu0 %v381
    %399 = vmatmul.f32.gmra.mxu0 %v379
    %v400 = vpop.f32.mrf.mxu0
    %v401 = vadd.f32 0.0, %v400
    %402 = vdwg.mxu0
    %403 = vrot.lane.b32.xlu0 %v197, 112
    %v404 = vpop.permute.xlu0 %403
    %405 = vrot.lane.b32.xlu0 %v223, 112
    %v406 = vpop.permute.xlu0 %405
    %v407 = vsel %vm251, %v404, 0
    %v409 = vsel %vm251, %v406, 0
    %411 = vmatpush.xpose.msra.mxu0 0.0
    %412 = vmatpush.xpose.msra.mxu0 0.0
    %413 = vmatpush.xpose.msra.mxu0 0.0
    %414 = vmatpush.xpose.msra.mxu0 0.0
    %415 = vmatpush.xpose.msra.mxu0 0.0
    %416 = vmatpush.xpose.msra.mxu0 0.0
    %417 = vmatpush.xpose.msra.mxu0 0.0
    %418 = vmatpush.xpose.msra.mxu0 0.0
    %419 = vmatpush.xpose.msra.mxu0 0.0
    %420 = vmatpush.xpose.msra.mxu0 0.0
    %421 = vmatpush.xpose.msra.mxu0 0.0
    %422 = vmatpush.xpose.msra.mxu0 0.0
    %423 = vmatpush.xpose.msra.mxu0 0.0
    %424 = vmatpush.xpose.msra.mxu0 0.0
    %425 = vmatpush.xpose.msra.mxu0 0.0
    %426 = vmatpush.xpose.msra.mxu0 %v409
    %427 = vmatmul.f32.gmra.mxu0 %v407
    %v428 = vpop.f32.mrf.mxu0
    %v429 = vadd.f32 0.0, %v428
    %430 = vdwg.mxu0
    %v431 = vmul.f32 %v401, 0.25
    %v432 = vmul.f32 %v429, 0.25
    %v433 = vsel %vm306, %v431, -inf
    %434 = vmax.xlane.f32.xlu0 %v433
    %v435 = vpop.xlane.xlu0 %434
    %v436 = vsel %vm306, %v432, -inf
    %437 = vmax.xlane.f32.xlu0 %v436
    %v438 = vpop.xlane.xlu0 %437
    %v439 = vsub.f32 %v431, %v435
    %v440 = vsub.f32 %v432, %v438
    %v441 = vmul.f32 %v439, 1.442695
    %v442 = vpow.pop %v441
    %v443 = vmul.f32 %v440, 1.442695
    %v444 = vpow.pop %v443
    %v445 = vsel %vm306, %v442, 0.0
    %446 = vadd.xlane.f32.xlu0 %v445
    %v447 = vpop.xlane.xlu0 %446
    %v448 = vsel %vm306, %v444, 0.0
    %449 = vadd.xlane.f32.xlu0 %v448
    %v450 = vpop.xlane.xlu0 %449
    %v451 = vrcp.pop %v447
    %v452 = vrcp.pop %v450
    %v453 = vmul.f32 %v442, %v451
    %v454 = vmul.f32 %v444, %v452
    %456 = vrot.lane.b32.xlu0 %v246, 112
    %v457 = vpop.permute.xlu0 %456
    %v460 = vsel %vm306, %v453, 0
    %462 = vmatpush.msra.mxu0 0.0
    %463 = vmatpush.msra.mxu0 0.0
    %464 = vmatpush.msra.mxu0 0.0
    %465 = vmatpush.msra.mxu0 0.0
    %466 = vmatpush.msra.mxu0 0.0
    %467 = vmatpush.msra.mxu0 0.0
    %468 = vmatpush.msra.mxu0 0.0
    %469 = vmatpush.msra.mxu0 0.0
    %470 = vmatpush.msra.mxu0 0.0
    %471 = vmatpush.msra.mxu0 0.0
    %472 = vmatpush.msra.mxu0 0.0
    %473 = vmatpush.msra.mxu0 0.0
    %474 = vmatpush.msra.mxu0 0.0
    %475 = vmatpush.msra.mxu0 0.0
    %476 = vmatpush.msra.mxu0 0.0
    %477 = vmatpush.msra.mxu0 %v457
    %478 = vmatmul.f32.gmra.mxu0 %v460
    %v479 = vpop.f32.mrf.mxu0
    %v480 = vadd.f32 0.0, %v479
    %481 = vdwg.mxu0
    %483 = vrot.lane.b32.xlu0 %v249, 112
    %v484 = vpop.permute.xlu0 %483
    %v487 = vsel %vm306, %v454, 0
    %489 = vmatpush.msra.mxu0 0.0
    %490 = vmatpush.msra.mxu0 0.0
    %491 = vmatpush.msra.mxu0 0.0
    %492 = vmatpush.msra.mxu0 0.0
    %493 = vmatpush.msra.mxu0 0.0
    %494 = vmatpush.msra.mxu0 0.0
    %495 = vmatpush.msra.mxu0 0.0
    %496 = vmatpush.msra.mxu0 0.0
    %497 = vmatpush.msra.mxu0 0.0
    %498 = vmatpush.msra.mxu0 0.0
    %499 = vmatpush.msra.mxu0 0.0
    %500 = vmatpush.msra.mxu0 0.0
    %501 = vmatpush.msra.mxu0 0.0
    %502 = vmatpush.msra.mxu0 0.0
    %503 = vmatpush.msra.mxu0 0.0
    %504 = vmatpush.msra.mxu0 %v484
    %505 = vmatmul.f32.gmra.mxu0 %v487
    %v506 = vpop.f32.mrf.mxu0
    %v507 = vadd.f32 0.0, %v506
    %508 = vdwg.mxu0
    %v510 = vsel %vm251, %v480, 0
    %v513 = vsel %vm251, %v507, 0
    %515 = vmatpush.msra.mxu0 0.0
    %516 = vmatpush.msra.mxu0 0.0
    %517 = vmatpush.msra.mxu0 0.0
    %518 = vmatpush.msra.mxu0 0.0
    %519 = vmatpush.msra.mxu0 0.0
    %520 = vmatpush.msra.mxu0 0.0
    %521 = vmatpush.msra.mxu0 0.0
    %522 = vmatpush.msra.mxu0 0.0
    %523 = vmatpush.msra.mxu0 0.0
    %524 = vmatpush.msra.mxu0 0.0
    %525 = vmatpush.msra.mxu0 0.0
    %526 = vmatpush.msra.mxu0 0.0
    %527 = vmatpush.msra.mxu0 0.0
    %528 = vmatpush.msra.mxu0 0.0
    %529 = vmatpush.msra.mxu0 %v144
    %530 = vmatpush.msra.mxu0 %v143
    %531 = vmatmul.f32.gmra.mxu0 %v510
    %v532 = vpop.f32.mrf.mxu0
    %v533 = vadd.f32 0.0, %v532
    %534 = vmatmul.f32.gmra.mxu0 %v513
    %v535 = vpop.f32.mrf.mxu0
    %v536 = vadd.f32 0.0, %v535
    %537 = vdwg.mxu0
    %v539 = vsel %vm251, %v350, 0
    %v542 = vsel %vm251, %v373, 0
    %544 = vmatpush.msra.mxu0 0.0
    %545 = vmatpush.msra.mxu0 0.0
    %546 = vmatpush.msra.mxu0 0.0
    %547 = vmatpush.msra.mxu0 0.0
    %548 = vmatpush.msra.mxu0 0.0
    %549 = vmatpush.msra.mxu0 0.0
    %550 = vmatpush.msra.mxu0 0.0
    %551 = vmatpush.msra.mxu0 0.0
    %552 = vmatpush.msra.mxu0 0.0
    %553 = vmatpush.msra.mxu0 0.0
    %554 = vmatpush.msra.mxu0 0.0
    %555 = vmatpush.msra.mxu0 0.0
    %556 = vmatpush.msra.mxu0 0.0
    %557 = vmatpush.msra.mxu0 0.0
    %558 = vmatpush.msra.mxu0 %v142
    %559 = vmatpush.msra.mxu0 %v141
    %560 = vmatmul.f32.gmra.mxu0 %v539
    %v561 = vpop.f32.mrf.mxu0
    %v562 = vadd.f32 %v533, %v561
    %563 = vmatmul.f32.gmra.mxu0 %v542
    %v564 = vpop.f32.mrf.mxu0
    %v565 = vadd.f32 %v536, %v564
    %566 = vdwg.mxu0
    %v568 = vperm.slane %v148, 0
    %v570 = vadd.f32 %v562, %v568
    %v571 = vadd.f32 %v565, %v568
    %v572 = vadd.f32 %v127, %v570
    %v573 = vadd.f32 %v128, %v571
    %v574 = vsel %vm67, %v572, 0.0
    %575 = vadd.xlane.f32.xlu0 %v574
    %v576 = vpop.xlane.xlu0 %575
    %v577 = vsel %vm67, %v573, 0.0
    %578 = vadd.xlane.f32.xlu0 %v577
    %v579 = vpop.xlane.xlu0 %578
    %v580 = vmul.f32 %v576, %v80
    %v581 = vmul.f32 %v579, %v80
    %v582 = vsub.f32 %v572, %v580
    %v583 = vsub.f32 %v573, %v581
    %v584 = vmul.f32 %v582, %v582
    %v585 = vmul.f32 %v583, %v583
    %v586 = vsel %vm67, %v584, 0.0
    %587 = vadd.xlane.f32.xlu0 %v586
    %v588 = vpop.xlane.xlu0 %587
    %v589 = vsel %vm67, %v585, 0.0
    %590 = vadd.xlane.f32.xlu0 %v589
    %v591 = vpop.xlane.xlu0 %590
    %v592 = vmul.f32 %v588, %v80
    %v593 = vmul.f32 %v591, %v80
    %v594 = vadd.f32 %v592, 1e-12
    %v595 = vadd.f32 %v593, 1e-12
    %v596 = vrsqrt.pop %v594
    %v597 = vmul.f32 %v596, %v594
    %v598 = vmul.f32 %v597, %v596
    %v599 = vmul.f32 0.5, %v598
    %v600 = vsub.f32 1.5, %v599
    %v601 = vmul.f32 %v596, %v600
    %vm602 = vweird.f32 %v594
    %vm603 = vweird.f32 %v596
    %vm604 = vmor %vm602, %vm603
    %v605 = vsel %vm604, %v596, %v601
    %v606 = vrsqrt.pop %v595
    %v607 = vmul.f32 %v606, %v595
    %v608 = vmul.f32 %v607, %v606
    %v609 = vmul.f32 0.5, %v608
    %v610 = vsub.f32 1.5, %v609
    %v611 = vmul.f32 %v606, %v610
    %vm612 = vweird.f32 %v595
    %vm613 = vweird.f32 %v606
    %vm614 = vmor %vm612, %vm613
    %v615 = vsel %vm614, %v606, %v611
    %v616 = vmul.f32 %v582, %v605
    %v617 = vmul.f32 %v583, %v615
    %v619 = vperm.slane %v149, 0
    %v621 = vmul.f32 %v616, %v619
    %v622 = vmul.f32 %v617, %v619
    %v624 = vperm.slane %v150, 0
    %v626 = vadd.f32 %v621, %v624
    %v627 = vadd.f32 %v622, %v624
    %v629 = vperm.slane %v155, 0
    %v632 = vsel %vm67, %v626, 0
    %v635 = vsel %vm67, %v627, 0
    %637 = vmatpush.msra.mxu0 0.0
    %638 = vmatpush.msra.mxu0 0.0
    %639 = vmatpush.msra.mxu0 0.0
    %640 = vmatpush.msra.mxu0 0.0
    %641 = vmatpush.msra.mxu0 0.0
    %642 = vmatpush.msra.mxu0 0.0
    %643 = vmatpush.msra.mxu0 0.0
    %644 = vmatpush.msra.mxu0 0.0
    %645 = vmatpush.msra.mxu0 0.0
    %646 = vmatpush.msra.mxu0 0.0
    %647 = vmatpush.msra.mxu0 0.0
    %648 = vmatpush.msra.mxu0 0.0
    %649 = vmatpush.msra.mxu0 %v154
    %650 = vmatpush.msra.mxu0 %v153
    %651 = vmatpush.msra.mxu0 %v152
    %652 = vmatpush.msra.mxu0 %v151
    %653 = vmatmul.f32.gmra.mxu0 %v632
    %v654 = vpop.f32.mrf.mxu0
    %v655 = vadd.f32 %v629, %v654
    %656 = vmatmul.f32.gmra.mxu0 %v635
    %v657 = vpop.f32.mrf.mxu0
    %v658 = vadd.f32 %v629, %v657
    %659 = vdwg.mxu0
    %v660 = vmul.f32 %v655, 0.5
    %v661 = vmul.f32 %v658, 0.5
    %v662 = vmul.f32 %v655, 0.044715
    %v663 = vmul.f32 %v658, 0.044715
    %v664 = vmul.f32 %v662, %v655
    %v665 = vmul.f32 %v663, %v658
    %v666 = vmul.f32 %v664, %v655
    %v667 = vmul.f32 %v665, %v658
    %v668 = vadd.f32 %v655, %v666
    %v669 = vadd.f32 %v658, %v667
    %v670 = vmul.f32 %v668, 0.7978846
    %v671 = vmul.f32 %v669, 0.7978846
    %v672 = vtanh.pop %v670
    %v673 = vtanh.pop %v671
    %v674 = vadd.f32 %v672, 1.0
    %v675 = vadd.f32 %v673, 1.0
    %v676 = vmul.f32 %v660, %v674
    %v677 = vmul.f32 %v661, %v675
    %v679 = vperm.slane %v164, 0
    %vm681 = vcmask 523264
    %v683 = vsel %vm681, %v676, 0
    %v686 = vsel %vm681, %v677, 0
    %688 = vmatpush.msra.mxu0 0.0
    %689 = vmatpush.msra.mxu0 0.0
    %690 = vmatpush.msra.mxu0 0.0
    %691 = vmatpush.msra.mxu0 0.0
    %692 = vmatpush.msra.mxu0 0.0
    %693 = vmatpush.msra.mxu0 0.0
    %694 = vmatpush.msra.mxu0 0.0
    %695 = vmatpush.msra.mxu0 0.0
    %696 = vmatpush.msra.mxu0 %v163
    %697 = vmatpush.msra.mxu0 %v162
    %698 = vmatpush.msra.mxu0 %v161
    %699 = vmatpush.msra.mxu0 %v160
    %700 = vmatpush.msra.mxu0 %v159
    %701 = vmatpush.msra.mxu0 %v158
    %702 = vmatpush.msra.mxu0 %v157
    %703 = vmatpush.msra.mxu0 %v156
    %704 = vmatmul.f32.gmra.mxu0 %v683
    %v705 = vpop.f32.mrf.mxu0
    %v706 = vadd.f32 %v679, %v705
    %707 = vmatmul.f32.gmra.mxu0 %v686
    %v708 = vpop.f32.mrf.mxu0
    %v709 = vadd.f32 %v679, %v708
    %710 = vdwg.mxu0
    %v711 = vadd.f32 %v626, %v706
    %v712 = vadd.f32 %v627, %v709
    %v713 = vsel %vm67, %v711, 0.0
    %714 = vadd.xlane.f32.xlu0 %v713
    %v715 = vpop.xlane.xlu0 %714
    %v716 = vsel %vm67, %v712, 0.0
    %717 = vadd.xlane.f32.xlu0 %v716
    %v718 = vpop.xlane.xlu0 %717
    %v719 = vmul.f32 %v715, %v80
    %v720 = vmul.f32 %v718, %v80
    %v721 = vsub.f32 %v711, %v719
    %v722 = vsub.f32 %v712, %v720
    %v723 = vmul.f32 %v721, %v721
    %v724 = vmul.f32 %v722, %v722
    %v725 = vsel %vm67, %v723, 0.0
    %726 = vadd.xlane.f32.xlu0 %v725
    %v727 = vpop.xlane.xlu0 %726
    %v728 = vsel %vm67, %v724, 0.0
    %729 = vadd.xlane.f32.xlu0 %v728
    %v730 = vpop.xlane.xlu0 %729
    %v731 = vmul.f32 %v727, %v80
    %v732 = vmul.f32 %v730, %v80
    %v733 = vadd.f32 %v731, 1e-12
    %v734 = vadd.f32 %v732, 1e-12
    %v735 = vrsqrt.pop %v733
    %v736 = vmul.f32 %v735, %v733
    %v737 = vmul.f32 %v736, %v735
    %v738 = vmul.f32 0.5, %v737
    %v739 = vsub.f32 1.5, %v738
    %v740 = vmul.f32 %v735, %v739
    %vm741 = vweird.f32 %v733
    %vm742 = vweird.f32 %v735
    %vm743 = vmor %vm741, %vm742
    %v744 = vsel %vm743, %v735, %v740
    %v745 = vrsqrt.pop %v734
    %v746 = vmul.f32 %v745, %v734
    %v747 = vmul.f32 %v746, %v745
    %v748 = vmul.f32 0.5, %v747
    %v749 = vsub.f32 1.5, %v748
    %v750 = vmul.f32 %v745, %v749
    %vm751 = vweird.f32 %v734
    %vm752 = vweird.f32 %v745
    %vm753 = vmor %vm751, %vm752
    %v754 = vsel %vm753, %v745, %v750
    %v755 = vmul.f32 %v721, %v744
    %v756 = vmul.f32 %v722, %v754
    %v758 = vperm.slane %v165, 0
    %v760 = vmul.f32 %v755, %v758
    %v761 = vmul.f32 %v756, %v758
    %v763 = vperm.slane %v166, 0
    %v765 = vadd.f32 %v760, %v763
    %v766 = vadd.f32 %v761, %v763
    %s767 = scalar_lea.vmem %s3, 32
    %v768 = vld [vmem:[%s767] sm:$0xff]
    %v769 = vld [vmem:[%s767 + $0x8] sm:$0xff]
    %v770 = vld [vmem:[%s767 + $0x10] sm:$0xff]
    %v771 = vld [vmem:[%s767 + $0x18] sm:$0xff]
    %s772 = scalar_lea.vmem %s5, 32
    %v773 = vld [vmem:[%s772] sm:$0xff]
    %v774 = vld [vmem:[%s772 + $0x8] sm:$0xff]
    %v775 = vld [vmem:[%s772 + $0x10] sm:$0xff]
    %v776 = vld [vmem:[%s772 + $0x18] sm:$0xff]
    %s777 = scalar_lea.vmem %s7, 32
    %v778 = vld [vmem:[%s777] sm:$0xff]
    %v779 = vld [vmem:[%s777 + $0x8] sm:$0xff]
    %v780 = vld [vmem:[%s777 + $0x10] sm:$0xff]
    %v781 = vld [vmem:[%s777 + $0x18] sm:$0xff]
    %s782 = scalar_lea.vmem %s9, 32
    %v783 = vld [vmem:[%s782] sm:$0xff]
    %v784 = vld [vmem:[%s782 + $0x8] sm:$0xff]
    %v785 = vld [vmem:[%s782 + $0x10] sm:$0xff]
    %v786 = vld [vmem:[%s782 + $0x18] sm:$0xff]
    %s787 = scalar_lea.vmem %s4, 1
    %v788 = vld [vmem:[%s787] sm:$0x1]
    %s789 = scalar_lea.vmem %s6, 1
    %v790 = vld [vmem:[%s789] sm:$0x1]
    %s791 = scalar_lea.vmem %s8, 1
    %v792 = vld [vmem:[%s791] sm:$0x1]
    %s793 = scalar_lea.vmem %s10, 1
    %v794 = vld [vmem:[%s793] sm:$0x1]
    %s795 = scalar_lea.vmem %s11, 1
    %v796 = vld [vmem:[%s795] sm:$0x1]
    %s797 = scalar_lea.vmem %s12, 1
    %v798 = vld [vmem:[%s797] sm:$0x1]
    %s799 = scalar_lea.vmem %s13, 32
    %v800 = vld [vmem:[%s799] sm:$0xff]
    %v801 = vld [vmem:[%s799 + $0x8] sm:$0xff]
    %v802 = vld [vmem:[%s799 + $0x10] sm:$0xff]
    %v803 = vld [vmem:[%s799 + $0x18] sm:$0xff]
    %s804 = scalar_lea.vmem %s14, 1
    %v805 = vld [vmem:[%s804] sm:$0x1]
    %s806 = scalar_lea.vmem %s15, 64
    %v807 = vld [vmem:[%s806] sm:$0xff]
    %v808 = vld [vmem:[%s806 + $0x8] sm:$0xff]
    %v809 = vld [vmem:[%s806 + $0x10] sm:$0xff]
    %v810 = vld [vmem:[%s806 + $0x18] sm:$0xff]
    %v811 = vld [vmem:[%s806 + $0x20] sm:$0xff]
    %v812 = vld [vmem:[%s806 + $0x28] sm:$0xff]
    %v813 = vld [vmem:[%s806 + $0x30] sm:$0xff]
    %v814 = vld [vmem:[%s806 + $0x38] sm:$0xff]
    %s815 = scalar_lea.vmem %s16, 1
    %v816 = vld [vmem:[%s815] sm:$0x1]
    %s817 = scalar_lea.vmem %s17, 1
    %v818 = vld [vmem:[%s817] sm:$0x1]
    %s819 = scalar_lea.vmem %s18, 1
    %v820 = vld [vmem:[%s819] sm:$0x1]
    %v822 = vperm.slane %v788, 0
    %v825 = vsel %vm67, %v765, 0
    %v828 = vsel %vm67, %v766, 0
    %830 = vmatpush.msra.mxu0 0.0
    %831 = vmatpush.msra.mxu0 0.0
    %832 = vmatpush.msra.mxu0 0.0
    %833 = vmatpush.msra.mxu0 0.0
    %834 = vmatpush.msra.mxu0 0.0
    %835 = vmatpush.msra.mxu0 0.0
    %836 = vmatpush.msra.mxu0 0.0
    %837 = vmatpush.msra.mxu0 0.0
    %838 = vmatpush.msra.mxu0 0.0
    %839 = vmatpush.msra.mxu0 0.0
    %840 = vmatpush.msra.mxu0 0.0
    %841 = vmatpush.msra.mxu0 0.0
    %842 = vmatpush.msra.mxu0 %v771
    %843 = vmatpush.msra.mxu0 %v770
    %844 = vmatpush.msra.mxu0 %v769
    %845 = vmatpush.msra.mxu0 %v768
    %846 = vmatmul.f32.gmra.mxu0 %v825
    %v847 = vpop.f32.mrf.mxu0
    %v848 = vadd.f32 %v822, %v847
    %849 = vmatmul.f32.gmra.mxu0 %v828
    %v850 = vpop.f32.mrf.mxu0
    %v851 = vadd.f32 %v822, %v850
    %852 = vdwg.mxu0
    %v854 = vperm.slane %v790, 0
    %856 = vmatpush.msra.mxu0 0.0
    %857 = vmatpush.msra.mxu0 0.0
    %858 = vmatpush.msra.mxu0 0.0
    %859 = vmatpush.msra.mxu0 0.0
    %860 = vmatpush.msra.mxu0 0.0
    %861 = vmatpush.msra.mxu0 0.0
    %862 = vmatpush.msra.mxu0 0.0
    %863 = vmatpush.msra.mxu0 0.0
    %864 = vmatpush.msra.mxu0 0.0
    %865 = vmatpush.msra.mxu0 0.0
    %866 = vmatpush.msra.mxu0 0.0
    %867 = vmatpush.msra.mxu0 0.0
    %868 = vmatpush.msra.mxu0 %v776
    %869 = vmatpush.msra.mxu0 %v775
    %870 = vmatpush.msra.mxu0 %v774
    %871 = vmatpush.msra.mxu0 %v773
    %872 = vmatmul.f32.gmra.mxu0 %v825
    %v873 = vpop.f32.mrf.mxu0
    %v874 = vadd.f32 %v854, %v873
    %875 = vmatmul.f32.gmra.mxu0 %v828
    %v876 = vpop.f32.mrf.mxu0
    %v877 = vadd.f32 %v854, %v876
    %878 = vdwg.mxu0
    %v880 = vperm.slane %v792, 0
    %882 = vmatpush.msra.mxu0 0.0
    %883 = vmatpush.msra.mxu0 0.0
    %884 = vmatpush.msra.mxu0 0.0
    %885 = vmatpush.msra.mxu0 0.0
    %886 = vmatpush.msra.mxu0 0.0
    %887 = vmatpush.msra.mxu0 0.0
    %888 = vmatpush.msra.mxu0 0.0
    %889 = vmatpush.msra.mxu0 0.0
    %890 = vmatpush.msra.mxu0 0.0
    %891 = vmatpush.msra.mxu0 0.0
    %892 = vmatpush.msra.mxu0 0.0
    %893 = vmatpush.msra.mxu0 0.0
    %894 = vmatpush.msra.mxu0 %v781
    %895 = vmatpush.msra.mxu0 %v780
    %896 = vmatpush.msra.mxu0 %v779
    %897 = vmatpush.msra.mxu0 %v778
    %898 = vmatmul.f32.gmra.mxu0 %v825
    %v899 = vpop.f32.mrf.mxu0
    %v900 = vadd.f32 %v880, %v899
    %901 = vmatmul.f32.gmra.mxu0 %v828
    %v902 = vpop.f32.mrf.mxu0
    %v903 = vadd.f32 %v880, %v902
    %904 = vdwg.mxu0
    %v906 = vsel %vm251, %v848, 0
    %v909 = vsel %vm251, %v874, 0
    %911 = vmatpush.xpose.msra.mxu0 0.0
    %912 = vmatpush.xpose.msra.mxu0 0.0
    %913 = vmatpush.xpose.msra.mxu0 0.0
    %914 = vmatpush.xpose.msra.mxu0 0.0
    %915 = vmatpush.xpose.msra.mxu0 0.0
    %916 = vmatpush.xpose.msra.mxu0 0.0
    %917 = vmatpush.xpose.msra.mxu0 0.0
    %918 = vmatpush.xpose.msra.mxu0 0.0
    %919 = vmatpush.xpose.msra.mxu0 0.0
    %920 = vmatpush.xpose.msra.mxu0 0.0
    %921 = vmatpush.xpose.msra.mxu0 0.0
    %922 = vmatpush.xpose.msra.mxu0 0.0
    %923 = vmatpush.xpose.msra.mxu0 0.0
    %924 = vmatpush.xpose.msra.mxu0 0.0
    %925 = vmatpush.xpose.msra.mxu0 0.0
    %926 = vmatpush.xpose.msra.mxu0 %v909
    %927 = vmatmul.f32.gmra.mxu0 %v906
    %v928 = vpop.f32.mrf.mxu0
    %v929 = vadd.f32 0.0, %v928
    %930 = vdwg.mxu0
    %v932 = vsel %vm251, %v851, 0
    %v935 = vsel %vm251, %v877, 0
    %937 = vmatpush.xpose.msra.mxu0 0.0
    %938 = vmatpush.xpose.msra.mxu0 0.0
    %939 = vmatpush.xpose.msra.mxu0 0.0
    %940 = vmatpush.xpose.msra.mxu0 0.0
    %941 = vmatpush.xpose.msra.mxu0 0.0
    %942 = vmatpush.xpose.msra.mxu0 0.0
    %943 = vmatpush.xpose.msra.mxu0 0.0
    %944 = vmatpush.xpose.msra.mxu0 0.0
    %945 = vmatpush.xpose.msra.mxu0 0.0
    %946 = vmatpush.xpose.msra.mxu0 0.0
    %947 = vmatpush.xpose.msra.mxu0 0.0
    %948 = vmatpush.xpose.msra.mxu0 0.0
    %949 = vmatpush.xpose.msra.mxu0 0.0
    %950 = vmatpush.xpose.msra.mxu0 0.0
    %951 = vmatpush.xpose.msra.mxu0 0.0
    %952 = vmatpush.xpose.msra.mxu0 %v935
    %953 = vmatmul.f32.gmra.mxu0 %v932
    %v954 = vpop.f32.mrf.mxu0
    %v955 = vadd.f32 0.0, %v954
    %956 = vdwg.mxu0
    %v957 = vmul.f32 %v929, 0.25
    %v958 = vmul.f32 %v955, 0.25
    %v959 = vsel %vm306, %v957, -inf
    %960 = vmax.xlane.f32.xlu0 %v959
    %v961 = vpop.xlane.xlu0 %960
    %v962 = vsel %vm306, %v958, -inf
    %963 = vmax.xlane.f32.xlu0 %v962
    %v964 = vpop.xlane.xlu0 %963
    %v965 = vsub.f32 %v957, %v961
    %v966 = vsub.f32 %v958, %v964
    %v967 = vmul.f32 %v965, 1.442695
    %v968 = vpow.pop %v967
    %v969 = vmul.f32 %v966, 1.442695
    %v970 = vpow.pop %v969
    %v971 = vsel %vm306, %v968, 0.0
    %972 = vadd.xlane.f32.xlu0 %v971
    %v973 = vpop.xlane.xlu0 %972
    %v974 = vsel %vm306, %v970, 0.0
    %975 = vadd.xlane.f32.xlu0 %v974
    %v976 = vpop.xlane.xlu0 %975
    %v977 = vrcp.pop %v973
    %v978 = vrcp.pop %v976
    %v979 = vmul.f32 %v968, %v977
    %v980 = vmul.f32 %v970, %v978
    %v982 = vsel %vm306, %v979, 0
    %984 = vmatpush.msra.mxu0 0.0
    %985 = vmatpush.msra.mxu0 0.0
    %986 = vmatpush.msra.mxu0 0.0
    %987 = vmatpush.msra.mxu0 0.0
    %988 = vmatpush.msra.mxu0 0.0
    %989 = vmatpush.msra.mxu0 0.0
    %990 = vmatpush.msra.mxu0 0.0
    %991 = vmatpush.msra.mxu0 0.0
    %992 = vmatpush.msra.mxu0 0.0
    %993 = vmatpush.msra.mxu0 0.0
    %994 = vmatpush.msra.mxu0 0.0
    %995 = vmatpush.msra.mxu0 0.0
    %996 = vmatpush.msra.mxu0 0.0
    %997 = vmatpush.msra.mxu0 0.0
    %998 = vmatpush.msra.mxu0 0.0
    %999 = vmatpush.msra.mxu0 %v900
    %1000 = vmatmul.f32.gmra.mxu0 %v982
    %v1001 = vpop.f32.mrf.mxu0
    %v1002 = vadd.f32 0.0, %v1001
    %1003 = vdwg.mxu0
    %v1005 = vsel %vm306, %v980, 0
    %1007 = vmatpush.msra.mxu0 0.0
    %1008 = vmatpush.msra.mxu0 0.0
    %1009 = vmatpush.msra.mxu0 0.0
    %1010 = vmatpush.msra.mxu0 0.0
    %1011 = vmatpush.msra.mxu0 0.0
    %1012 = vmatpush.msra.mxu0 0.0
    %1013 = vmatpush.msra.mxu0 0.0
    %1014 = vmatpush.msra.mxu0 0.0
    %1015 = vmatpush.msra.mxu0 0.0
    %1016 = vmatpush.msra.mxu0 0.0
    %1017 = vmatpush.msra.mxu0 0.0
    %1018 = vmatpush.msra.mxu0 0.0
    %1019 = vmatpush.msra.mxu0 0.0
    %1020 = vmatpush.msra.mxu0 0.0
    %1021 = vmatpush.msra.mxu0 0.0
    %1022 = vmatpush.msra.mxu0 %v903
    %1023 = vmatmul.f32.gmra.mxu0 %v1005
    %v1024 = vpop.f32.mrf.mxu0
    %v1025 = vadd.f32 0.0, %v1024
    %1026 = vdwg.mxu0
    %1027 = vrot.lane.b32.xlu0 %v848, 112
    %v1028 = vpop.permute.xlu0 %1027
    %1029 = vrot.lane.b32.xlu0 %v874, 112
    %v1030 = vpop.permute.xlu0 %1029
    %v1031 = vsel %vm251, %v1028, 0
    %v1033 = vsel %vm251, %v1030, 0
    %1035 = vmatpush.xpose.msra.mxu0 0.0
    %1036 = vmatpush.xpose.msra.mxu0 0.0
    %1037 = vmatpush.xpose.msra.mxu0 0.0
    %1038 = vmatpush.xpose.msra.mxu0 0.0
    %1039 = vmatpush.xpose.msra.mxu0 0.0
    %1040 = vmatpush.xpose.msra.mxu0 0.0
    %1041 = vmatpush.xpose.msra.mxu0 0.0
    %1042 = vmatpush.xpose.msra.mxu0 0.0
    %1043 = vmatpush.xpose.msra.mxu0 0.0
    %1044 = vmatpush.xpose.msra.mxu0 0.0
    %1045 = vmatpush.xpose.msra.mxu0 0.0
    %1046 = vmatpush.xpose.msra.mxu0 0.0
    %1047 = vmatpush.xpose.msra.mxu0 0.0
    %1048 = vmatpush.xpose.msra.mxu0 0.0
    %1049 = vmatpush.xpose.msra.mxu0 0.0
    %1050 = vmatpush.xpose.msra.mxu0 %v1033
    %1051 = vmatmul.f32.gmra.mxu0 %v1031
    %v1052 = vpop.f32.mrf.mxu0
    %v1053 = vadd.f32 0.0, %v1052
    %1054 = vdwg.mxu0
    %1055 = vrot.lane.b32.xlu0 %v851, 112
    %v1056 = vpop.permute.xlu0 %1055
    %1057 = vrot.lane.b32.xlu0 %v877, 112
    %v1058 = vpop.permute.xlu0 %1057
    %v1059 = vsel %vm251, %v1056, 0
    %v1061 = vsel %vm251, %v1058, 0
    %1063 = vmatpush.xpose.msra.mxu0 0.0
    %1064 = vmatpush.xpose.msra.mxu0 0.0
    %1065 = vmatpush.xpose.msra.mxu0 0.0
    %1066 = vmatpush.xpose.msra.mxu0 0.0
    %1067 = vmatpush.xpose.msra.mxu0 0.0
    %1068 = vmatpush.xpose.msra.mxu0 0.0
    %1069 = vmatpush.xpose.msra.mxu0 0.0
    %1070 = vmatpush.xpose.msra.mxu0 0.0
    %1071 = vmatpush.xpose.msra.mxu0 0.0
    %1072 = vmatpush.xpose.msra.mxu0 0.0
    %1073 = vmatpush.xpose.msra.mxu0 0.0
    %1074 = vmatpush.xpose.msra.mxu0 0.0
    %1075 = vmatpush.xpose.msra.mxu0 0.0
    %1076 = vmatpush.xpose.msra.mxu0 0.0
    %1077 = vmatpush.xpose.msra.mxu0 0.0
    %1078 = vmatpush.xpose.msra.mxu0 %v1061
    %1079 = vmatmul.f32.gmra.mxu0 %v1059
    %v1080 = vpop.f32.mrf.mxu0
    %v1081 = vadd.f32 0.0, %v1080
    %1082 = vdwg.mxu0
    %v1083 = vmul.f32 %v1053, 0.25
    %v1084 = vmul.f32 %v1081, 0.25
    %v1085 = vsel %vm306, %v1083, -inf
    %1086 = vmax.xlane.f32.xlu0 %v1085
    %v1087 = vpop.xlane.xlu0 %1086
    %v1088 = vsel %vm306, %v1084, -inf
    %1089 = vmax.xlane.f32.xlu0 %v1088
    %v1090 = vpop.xlane.xlu0 %1089
    %v1091 = vsub.f32 %v1083, %v1087
    %v1092 = vsub.f32 %v1084, %v1090
    %v1093 = vmul.f32 %v1091, 1.442695
    %v1094 = vpow.pop %v1093
    %v1095 = vmul.f32 %v1092, 1.442695
    %v1096 = vpow.pop %v1095
    %v1097 = vsel %vm306, %v1094, 0.0
    %1098 = vadd.xlane.f32.xlu0 %v1097
    %v1099 = vpop.xlane.xlu0 %1098
    %v1100 = vsel %vm306, %v1096, 0.0
    %1101 = vadd.xlane.f32.xlu0 %v1100
    %v1102 = vpop.xlane.xlu0 %1101
    %v1103 = vrcp.pop %v1099
    %v1104 = vrcp.pop %v1102
    %v1105 = vmul.f32 %v1094, %v1103
    %v1106 = vmul.f32 %v1096, %v1104
    %1108 = vrot.lane.b32.xlu0 %v900, 112
    %v1109 = vpop.permute.xlu0 %1108
    %v1112 = vsel %vm306, %v1105, 0
    %1114 = vmatpush.msra.mxu0 0.0
    %1115 = vmatpush.msra.mxu0 0.0
    %1116 = vmatpush.msra.mxu0 0.0
    %1117 = vmatpush.msra.mxu0 0.0
    %1118 = vmatpush.msra.mxu0 0.0
    %1119 = vmatpush.msra.mxu0 0.0
    %1120 = vmatpush.msra.mxu0 0.0
    %1121 = vmatpush.msra.mxu0 0.0
    %1122 = vmatpush.msra.mxu0 0.0
    %1123 = vmatpush.msra.mxu0 0.0
    %1124 = vmatpush.msra.mxu0 0.0
    %1125 = vmatpush.msra.mxu0 0.0
    %1126 = vmatpush.msra.mxu0 0.0
    %1127 = vmatpush.msra.mxu0 0.0
    %1128 = vmatpush.msra.mxu0 0.0
    %1129 = vmatpush.msra.mxu0 %v1109
    %1130 = vmatmul.f32.gmra.mxu0 %v1112
    %v1131 = vpop.f32.mrf.mxu0
    %v1132 = vadd.f32 0.0, %v1131
    %1133 = vdwg.mxu0
    %1135 = vrot.lane.b32.xlu0 %v903, 112
    %v1136 = vpop.permute.xlu0 %1135
    %v1139 = vsel %vm306, %v1106, 0
    %1141 = vmatpush.msra.mxu0 0.0
    %1142 = vmatpush.msra.mxu0 0.0
    %1143 = vmatpush.msra.mxu0 0.0
    %1144 = vmatpush.msra.mxu0 0.0
    %1145 = vmatpush.msra.mxu0 0.0
    %1146 = vmatpush.msra.mxu0 0.0
    %1147 = vmatpush.msra.mxu0 0.0
    %1148 = vmatpush.msra.mxu0 0.0
    %1149 = vmatpush.msra.mxu0 0.0
    %1150 = vmatpush.msra.mxu0 0.0
    %1151 = vmatpush.msra.mxu0 0.0
    %1152 = vmatpush.msra.mxu0 0.0
    %1153 = vmatpush.msra.mxu0 0.0
    %1154 = vmatpush.msra.mxu0 0.0
    %1155 = vmatpush.msra.mxu0 0.0
    %1156 = vmatpush.msra.mxu0 %v1136
    %1157 = vmatmul.f32.gmra.mxu0 %v1139
    %v1158 = vpop.f32.mrf.mxu0
    %v1159 = vadd.f32 0.0, %v1158
    %1160 = vdwg.mxu0
    %v1162 = vsel %vm251, %v1132, 0
    %v1165 = vsel %vm251, %v1159, 0
    %1167 = vmatpush.msra.mxu0 0.0
    %1168 = vmatpush.msra.mxu0 0.0
    %1169 = vmatpush.msra.mxu0 0.0
    %1170 = vmatpush.msra.mxu0 0.0
    %1171 = vmatpush.msra.mxu0 0.0
    %1172 = vmatpush.msra.mxu0 0.0
    %1173 = vmatpush.msra.mxu0 0.0
    %1174 = vmatpush.msra.mxu0 0.0
    %1175 = vmatpush.msra.mxu0 0.0
    %1176 = vmatpush.msra.mxu0 0.0
    %1177 = vmatpush.msra.mxu0 0.0
    %1178 = vmatpush.msra.mxu0 0.0
    %1179 = vmatpush.msra.mxu0 0.0
    %1180 = vmatpush.msra.mxu0 0.0
    %1181 = vmatpush.msra.mxu0 %v786
    %1182 = vmatpush.msra.mxu0 %v785
    %1183 = vmatmul.f32.gmra.mxu0 %v1162
    %v1184 = vpop.f32.mrf.mxu0
    %v1185 = vadd.f32 0.0, %v1184
    %1186 = vmatmul.f32.gmra.mxu0 %v1165
    %v1187 = vpop.f32.mrf.mxu0
    %v1188 = vadd.f32 0.0, %v1187
    %1189 = vdwg.mxu0
    %v1191 = vsel %vm251, %v1002, 0
    %v1194 = vsel %vm251, %v1025, 0
    %1196 = vmatpush.msra.mxu0 0.0
    %1197 = vmatpush.msra.mxu0 0.0
    %1198 = vmatpush.msra.mxu0 0.0
    %1199 = vmatpush.msra.mxu0 0.0
    %1200 = vmatpush.msra.mxu0 0.0
    %1201 = vmatpush.msra.mxu0 0.0
    %1202 = vmatpush.msra.mxu0 0.0
    %1203 = vmatpush.msra.mxu0 0.0
    %1204 = vmatpush.msra.mxu0 0.0
    %1205 = vmatpush.msra.mxu0 0.0
    %1206 = vmatpush.msra.mxu0 0.0
    %1207 = vmatpush.msra.mxu0 0.0
    %1208 = vmatpush.msra.mxu0 0.0
    %1209 = vmatpush.msra.mxu0 0.0
    %1210 = vmatpush.msra.mxu0 %v784
    %1211 = vmatpush.msra.mxu0 %v783
    %1212 = vmatmul.f32.gmra.mxu0 %v1191
    %v1213 = vpop.f32.mrf.mxu0
    %v1214 = vadd.f32 %v1185, %v1213
    %1215 = vmatmul.f32.gmra.mxu0 %v1194
    %v1216 = vpop.f32.mrf.mxu0
    %v1217 = vadd.f32 %v1188, %v1216
    %1218 = vdwg.mxu0
    %v1220 = vperm.slane %v794, 0
    %v1222 = vadd.f32 %v1214, %v1220
    %v1223 = vadd.f32 %v1217, %v1220
    %v1224 = vadd.f32 %v765, %v1222
    %v1225 = vadd.f32 %v766, %v1223
    %v1226 = vsel %vm67, %v1224, 0.0
    %1227 = vadd.xlane.f32.xlu0 %v1226
    %v1228 = vpop.xlane.xlu0 %1227
    %v1229 = vsel %vm67, %v1225, 0.0
    %1230 = vadd.xlane.f32.xlu0 %v1229
    %v1231 = vpop.xlane.xlu0 %1230
    %v1232 = vmul.f32 %v1228, %v80
    %v1233 = vmul.f32 %v1231, %v80
    %v1234 = vsub.f32 %v1224, %v1232
    %v1235 = vsub.f32 %v1225, %v1233
    %v1236 = vmul.f32 %v1234, %v1234
    %v1237 = vmul.f32 %v1235, %v1235
    %v1238 = vsel %vm67, %v1236, 0.0
    %1239 = vadd.xlane.f32.xlu0 %v1238
    %v1240 = vpop.xlane.xlu0 %1239
    %v1241 = vsel %vm67, %v1237, 0.0
    %1242 = vadd.xlane.f32.xlu0 %v1241
    %v1243 = vpop.xlane.xlu0 %1242
    %v1244 = vmul.f32 %v1240, %v80
    %v1245 = vmul.f32 %v1243, %v80
    %v1246 = vadd.f32 %v1244, 1e-12
    %v1247 = vadd.f32 %v1245, 1e-12
    %v1248 = vrsqrt.pop %v1246
    %v1249 = vmul.f32 %v1248, %v1246
    %v1250 = vmul.f32 %v1249, %v1248
    %v1251 = vmul.f32 0.5, %v1250
    %v1252 = vsub.f32 1.5, %v1251
    %v1253 = vmul.f32 %v1248, %v1252
    %vm1254 = vweird.f32 %v1246
    %vm1255 = vweird.f32 %v1248
    %vm1256 = vmor %vm1254, %vm1255
    %v1257 = vsel %vm1256, %v1248, %v1253
    %v1258 = vrsqrt.pop %v1247
    %v1259 = vmul.f32 %v1258, %v1247
    %v1260 = vmul.f32 %v1259, %v1258
    %v1261 = vmul.f32 0.5, %v1260
    %v1262 = vsub.f32 1.5, %v1261
    %v1263 = vmul.f32 %v1258, %v1262
    %vm1264 = vweird.f32 %v1247
    %vm1265 = vweird.f32 %v1258
    %vm1266 = vmor %vm1264, %vm1265
    %v1267 = vsel %vm1266, %v1258, %v1263
    %v1268 = vmul.f32 %v1234, %v1257
    %v1269 = vmul.f32 %v1235, %v1267
    %v1271 = vperm.slane %v796, 0
    %v1273 = vmul.f32 %v1268, %v1271
    %v1274 = vmul.f32 %v1269, %v1271
    %v1276 = vperm.slane %v798, 0
    %v1278 = vadd.f32 %v1273, %v1276
    %v1279 = vadd.f32 %v1274, %v1276
    %v1281 = vperm.slane %v805, 0
    %v1284 = vsel %vm67, %v1278, 0
    %v1287 = vsel %vm67, %v1279, 0
    %1289 = vmatpush.msra.mxu0 0.0
    %1290 = vmatpush.msra.mxu0 0.0
    %1291 = vmatpush.msra.mxu0 0.0
    %1292 = vmatpush.msra.mxu0 0.0
    %1293 = vmatpush.msra.mxu0 0.0
    %1294 = vmatpush.msra.mxu0 0.0
    %1295 = vmatpush.msra.mxu0 0.0
    %1296 = vmatpush.msra.mxu0 0.0
    %1297 = vmatpush.msra.mxu0 0.0
    %1298 = vmatpush.msra.mxu0 0.0
    %1299 = vmatpush.msra.mxu0 0.0
    %1300 = vmatpush.msra.mxu0 0.0
    %1301 = vmatpush.msra.mxu0 %v803
    %1302 = vmatpush.msra.mxu0 %v802
    %1303 = vmatpush.msra.mxu0 %v801
    %1304 = vmatpush.msra.mxu0 %v800
    %1305 = vmatmul.f32.gmra.mxu0 %v1284
    %v1306 = vpop.f32.mrf.mxu0
    %v1307 = vadd.f32 %v1281, %v1306
    %1308 = vmatmul.f32.gmra.mxu0 %v1287
    %v1309 = vpop.f32.mrf.mxu0
    %v1310 = vadd.f32 %v1281, %v1309
    %1311 = vdwg.mxu0
    %v1312 = vmul.f32 %v1307, 0.5
    %v1313 = vmul.f32 %v1310, 0.5
    %v1314 = vmul.f32 %v1307, 0.044715
    %v1315 = vmul.f32 %v1310, 0.044715
    %v1316 = vmul.f32 %v1314, %v1307
    %v1317 = vmul.f32 %v1315, %v1310
    %v1318 = vmul.f32 %v1316, %v1307
    %v1319 = vmul.f32 %v1317, %v1310
    %v1320 = vadd.f32 %v1307, %v1318
    %v1321 = vadd.f32 %v1310, %v1319
    %v1322 = vmul.f32 %v1320, 0.7978846
    %v1323 = vmul.f32 %v1321, 0.7978846
    %v1324 = vtanh.pop %v1322
    %v1325 = vtanh.pop %v1323
    %v1326 = vadd.f32 %v1324, 1.0
    %v1327 = vadd.f32 %v1325, 1.0
    %v1328 = vmul.f32 %v1312, %v1326
    %v1329 = vmul.f32 %v1313, %v1327
    %v1331 = vperm.slane %v816, 0
    %v1334 = vsel %vm681, %v1328, 0
    %v1337 = vsel %vm681, %v1329, 0
    %1339 = vmatpush.msra.mxu0 0.0
    %1340 = vmatpush.msra.mxu0 0.0
    %1341 = vmatpush.msra.mxu0 0.0
    %1342 = vmatpush.msra.mxu0 0.0
    %1343 = vmatpush.msra.mxu0 0.0
    %1344 = vmatpush.msra.mxu0 0.0
    %1345 = vmatpush.msra.mxu0 0.0
    %1346 = vmatpush.msra.mxu0 0.0
    %1347 = vmatpush.msra.mxu0 %v814
    %1348 = vmatpush.msra.mxu0 %v813
    %1349 = vmatpush.msra.mxu0 %v812
    %1350 = vmatpush.msra.mxu0 %v811
    %1351 = vmatpush.msra.mxu0 %v810
    %1352 = vmatpush.msra.mxu0 %v809
    %1353 = vmatpush.msra.mxu0 %v808
    %1354 = vmatpush.msra.mxu0 %v807
    %1355 = vmatmul.f32.gmra.mxu0 %v1334
    %v1356 = vpop.f32.mrf.mxu0
    %v1357 = vadd.f32 %v1331, %v1356
    %1358 = vmatmul.f32.gmra.mxu0 %v1337
    %v1359 = vpop.f32.mrf.mxu0
    %v1360 = vadd.f32 %v1331, %v1359
    %1361 = vdwg.mxu0
    %v1362 = vadd.f32 %v1278, %v1357
    %v1363 = vadd.f32 %v1279, %v1360
    %v1364 = vsel %vm67, %v1362, 0.0
    %1365 = vadd.xlane.f32.xlu0 %v1364
    %v1366 = vpop.xlane.xlu0 %1365
    %v1367 = vsel %vm67, %v1363, 0.0
    %1368 = vadd.xlane.f32.xlu0 %v1367
    %v1369 = vpop.xlane.xlu0 %1368
    %v1370 = vmul.f32 %v1366, %v80
    %v1371 = vmul.f32 %v1369, %v80
    %v1372 = vsub.f32 %v1362, %v1370
    %v1373 = vsub.f32 %v1363, %v1371
    %v1374 = vmul.f32 %v1372, %v1372
    %v1375 = vmul.f32 %v1373, %v1373
    %v1376 = vsel %vm67, %v1374, 0.0
    %1377 = vadd.xlane.f32.xlu0 %v1376
    %v1378 = vpop.xlane.xlu0 %1377
    %v1379 = vsel %vm67, %v1375, 0.0
    %1380 = vadd.xlane.f32.xlu0 %v1379
    %v1381 = vpop.xlane.xlu0 %1380
    %v1382 = vmul.f32 %v1378, %v80
    %v1383 = vmul.f32 %v1381, %v80
    %v1384 = vadd.f32 %v1382, 1e-12
    %v1385 = vadd.f32 %v1383, 1e-12
    %v1386 = vrsqrt.pop %v1384
    %v1387 = vmul.f32 %v1386, %v1384
    %v1388 = vmul.f32 %v1387, %v1386
    %v1389 = vmul.f32 0.5, %v1388
    %v1390 = vsub.f32 1.5, %v1389
    %v1391 = vmul.f32 %v1386, %v1390
    %vm1392 = vweird.f32 %v1384
    %vm1393 = vweird.f32 %v1386
    %vm1394 = vmor %vm1392, %vm1393
    %v1395 = vsel %vm1394, %v1386, %v1391
    %v1396 = vrsqrt.pop %v1385
    %v1397 = vmul.f32 %v1396, %v1385
    %v1398 = vmul.f32 %v1397, %v1396
    %v1399 = vmul.f32 0.5, %v1398
    %v1400 = vsub.f32 1.5, %v1399
    %v1401 = vmul.f32 %v1396, %v1400
    %vm1402 = vweird.f32 %v1385
    %vm1403 = vweird.f32 %v1396
    %vm1404 = vmor %vm1402, %vm1403
    %v1405 = vsel %vm1404, %v1396, %v1401
    %v1406 = vmul.f32 %v1372, %v1395
    %v1407 = vmul.f32 %v1373, %v1405
    %v1409 = vperm.slane %v818, 0
    %v1411 = vmul.f32 %v1406, %v1409
    %v1412 = vmul.f32 %v1407, %v1409
    %v1414 = vperm.slane %v820, 0
    %v1416 = vadd.f32 %v1411, %v1414
    %v1417 = vadd.f32 %v1412, %v1414
    %v1418 = vsel %vm67, %v1416, 0.0
    %v1419 = vrot.slane %v1418, 4
    %v1420 = vadd.f32 %v1418, %v1419
    %v1421 = vrot.slane %v1420, 2
    %v1422 = vadd.f32 %v1420, %v1421
    %v1423 = vrot.slane %v1422, 1
    %v1424 = vadd.f32 %v1422, %v1423
    %v1425 = vsel %vm67, %v1417, 0.0
    %v1426 = vrot.slane %v1425, 4
    %v1427 = vadd.f32 %v1425, %v1426
    %v1428 = vrot.slane %v1427, 2
    %v1429 = vadd.f32 %v1427, %v1428
    %v1430 = vrot.slane %v1429, 1
    %v1431 = vadd.f32 %v1429, %v1430
    %v1432 = vrcp.pop 8.0
    %v1433 = vmul.f32 8.0, %v1432
    %v1434 = vsub.f32 1.0, %v1433
    %v1435 = vmul.f32 %v1432, %v1434
    %v1436 = vadd.f32 %v1432, %v1435
    %vm1437 = vweird.f32 %v1432
    %v1438 = vsel %vm1437, %v1432, %v1436
    %v1439 = vmul.f32 %v1424, %v1438
    %v1440 = vmul.f32 %v1431, %v1438
    %vm1443 = vcmask 1041409
    %v1444 = vsel %vm1443, %v1440, %v1439
    %vm1446 = vcmask 254976
    %1447 = vst.msk [vmem:[#allocation2] sm:$0x3] %vm1446, %v1444
    // Predicated region
    $region78: #{_encoder_bert_forward.1} parent=1 // pred_check
      _
    $region79: #{_encoder_bert_forward.1} parent=1 // pred_check_branch
      %1449 = sbr.rel (0) target = $region81
    $region80: #{_encoder_bert_forward.1} parent=1 // pred_region
      %1451 = vsyncadd [#allocation3], 0
      %s1453 = sshll.u32 [#allocation2], 4
      %s1454 = int_to_ptr.vmem [resolvable:$true] %s1453
      %s1455 = sshll.u32 %s19, 4
      %s1456 = int_to_ptr.hbm [resolvable:$true] %s1455
      %1458 = dma.vmem_to_hbm [thread:$0]  %s1454, 32, %s1456, [#allocation3]
    $region81: #{_encoder_bert_forward.1} parent=1 // pred_fallthru
      _
    // Predicated region
    $region82: #{_encoder_bert_forward.1} parent=1 // pred_check
      _
    $region83: #{_encoder_bert_forward.1} parent=1 // pred_check_branch
      %1460 = sbr.rel (0) target = $region85
    $region84: #{_encoder_bert_forward.1} parent=1 // pred_region
      %1462 = dma.done [#allocation3], 32
    $region85: #{_encoder_bert_forward.1} parent=1 // pred_fallthru
      _
    %1463 = vsyncpa [#allocation3], 1

</llo_original>
